<compile_context>
chip_gen: v7x
topology: tpu7x:2x2x1
jax: 0.10.0
libtpu: 0.0.40
codegen_flags: <defaults>
</compile_context>

<pallas_src>
import jax
import jax.numpy as jnp
from jax import lax
from jax.experimental import pallas as pl
from jax.experimental.pallas import tpu as pltpu


# ---------------------------------------------------------------------------
# Fused Pallas kernel (one batch element per grid step, everything in VMEM)
# ---------------------------------------------------------------------------
def _fused_kernel(x_ref, w1_ref, b1_ref, mask_ref, wband_ref, bp_ref,
                  o_ref, rhs_ref):
    """
    x_ref    : (1, Cin*Hp, Wp)    zero-padded input, (channel,row)-major
    w1_ref   : (Cm*Hp, Cin*Hp)    conv_1 weight (x) I_Hp
    b1_ref   : (Cm*Hp, 1)         conv_1 bias, repeated per row
    mask_ref : (Cm*Hp, Wp)        1 on conv_2's interior, 0 on its zero-pad ring
    wband_ref: (Cout*Ho, 9*Cm*Hp) folded conv_2∘conv_3 banded weight
    bp_ref   : (Cout*Ho, 1)       folded bias
    o_ref    : (1, Cout*Ho, Wo)
    rhs_ref  : (9*Cm*Hp, Wo)      scratch: width-shifted copies of v4
    """
    rows = mask_ref.shape[0]              # Cm * Hp
    wo = o_ref.shape[2]                   # output width
    ktaps = rhs_ref.shape[0] // rows      # 9

    # ---- conv_1 (+bias) + folded elementwise chain + conv_2 zero-pad mask --
    x = x_ref[0]
    v1 = jnp.dot(w1_ref[...], x, preferred_element_type=jnp.float32)
    v1 = v1 + b1_ref[...]
    v4 = (1.5 - 0.5 * jnp.maximum(jnp.tanh(v1), 0.0)) * mask_ref[...]

    # ---- folded conv_2+conv_3: im2col along width only (height taps live in
    # the banded weight), then a single MXU matmul over K = 9*Cm*Hp ----------
    for kw in range(ktaps):
        rhs_ref[kw * rows:(kw + 1) * rows, :] = v4[:, kw:kw + wo]
    acc = jnp.dot(wband_ref[...], rhs_ref[...],
                  preferred_element_type=jnp.float32)
    o_ref[0] = jnp.maximum(acc + bp_ref[...], 0.0).astype(o_ref.dtype)


# ---------------------------------------------------------------------------
# One-time host-side parameter folding
# ---------------------------------------------------------------------------
def prepare_params(w1, b1, w2, b2, w3, b3, H, W):
    Cm, Cin = w1.shape[0], w1.shape[1]
    Cout, _, K, _ = w3.shape
    Hp, Wp = H + 4, W + 4                 # after conv_1 pad 1 + conv_2 pad 1
    Ho, Wo = Hp - K + 1, Wp - K + 1

    w1m = w1[:, :, 0, 0].astype(jnp.float32)              # (Cm, Cin)
    w2m = w2[:, :, 0, 0].astype(jnp.float32)              # (Cm2, Cm)

    # fold conv_2 (linear) into conv_3 (exact; conv_2 bias seen through all taps)
    wf = jnp.einsum('omhw,mi->oihw', w3, w2m)              # (Cout, Cm, K, K)
    bf = b3 + jnp.einsum('omhw,m->o', w3, b2)              # (Cout,)

    # conv_1 as (w1 ⊗ I_Hp): output already in (Cm*Hp, Wp) layout
    eye = jnp.eye(Hp, dtype=jnp.float32)
    bigw1 = jnp.einsum('oc,hk->ohck', w1m, eye).reshape(Cm * Hp, Cin * Hp)
    b1e = jnp.repeat(b1.astype(jnp.float32), Hp).reshape(Cm * Hp, 1)

    # interior mask implementing conv_2's zero padding (outer ring -> 0)
    hm = ((jnp.arange(Hp) >= 1) & (jnp.arange(Hp) <= Hp - 2)).astype(jnp.float32)
    wm = ((jnp.arange(Wp) >= 1) & (jnp.arange(Wp) <= Wp - 2)).astype(jnp.float32)
    mask = jnp.tile(hm[:, None] * wm[None, :], (Cm, 1))    # (Cm*Hp, Wp)

    # banded conv_3 weight: contraction over (kw, c, h); height taps baked in
    kh = jnp.arange(Hp)[None, :] - jnp.arange(Ho)[:, None]      # (Ho, Hp)
    valid = ((kh >= 0) & (kh < K)).astype(jnp.float32)
    khc = jnp.clip(kh, 0, K - 1)
    g = wf[:, :, khc, :]                                         # (Cout, Cm, Ho, Hp, K)
    g = g * valid[None, None, :, :, None]
    band = jnp.transpose(g, (4, 0, 2, 1, 3)).reshape(K, Cout * Ho, Cm * Hp)
    wband2d = jnp.transpose(band, (1, 0, 2)).reshape(Cout * Ho, K * Cm * Hp)
    bpe = jnp.repeat(bf, Ho).reshape(Cout * Ho, 1)

    return bigw1, b1e, mask, wband2d, bpe


# ---------------------------------------------------------------------------
# Forward wrapper (single pallas_call)
# ---------------------------------------------------------------------------
@jax.jit
def model_forward(x, prepped):
    bigw1, b1e, mask, wband2d, bpe = prepped
    N, Cin, H, W = x.shape
    Hp, Wp = H + 4, W + 4
    rows = mask.shape[0]                      # Cm * Hp
    ktaps = wband2d.shape[1] // rows          # 9
    Ho, Wo = Hp - ktaps + 1, Wp - ktaps + 1
    cout_ho = wband2d.shape[0]
    Cout = cout_ho // Ho

    xp = jnp.pad(x, ((0, 0), (0, 0), (2, 2), (2, 2))).reshape(N, Cin * Hp, Wp)

    out = pl.pallas_call(
        _fused_kernel,
        out_shape=jax.ShapeDtypeStruct((N, cout_ho, Wo), jnp.float32),
        grid_spec=pltpu.PrefetchScalarGridSpec(
            num_scalar_prefetch=0,
            grid=(N,),
            in_specs=[
                pl.BlockSpec((1, Cin * Hp, Wp), lambda n: (n, 0, 0)),
                pl.BlockSpec(bigw1.shape, lambda n: (0, 0)),
                pl.BlockSpec(b1e.shape, lambda n: (0, 0)),
                pl.BlockSpec(mask.shape, lambda n: (0, 0)),
                pl.BlockSpec(wband2d.shape, lambda n: (0, 0)),
                pl.BlockSpec(bpe.shape, lambda n: (0, 0)),
            ],
            out_specs=pl.BlockSpec((1, cout_ho, Wo), lambda n: (n, 0, 0)),
            scratch_shapes=[pltpu.VMEM((ktaps * rows, Wo), jnp.float32)],
        ),
        compiler_params=pltpu.CompilerParams(
            dimension_semantics=("parallel",)),
    )(xp, bigw1, b1e, mask, wband2d, bpe)
    return out.reshape(N, Cout, Ho, Wo)


# ---------------------------------------------------------------------------
# Pure-JAX reference (for correctness check)
# ---------------------------------------------------------------------------
def _conv_ref(x, w, b, pad):
    y = lax.conv_general_dilated(
        x, w, window_strides=(1, 1),
        padding=[(pad, pad), (pad, pad)],
        dimension_numbers=('NCHW', 'OIHW', 'NCHW'),
        precision=lax.Precision.HIGHEST)
    return y + b[None, :, None, None]


def _reference_forward(x, params):
    w1, b1, w2, b2, w3, b3 = params
    v1 = _conv_ref(x, w1, b1, 1)
    v2 = jnp.maximum(jnp.tanh(v1), 0.0) + 1.0
    v3 = v2 / 2.0
    v4 = -v3 + 2.0
    v5 = _conv_ref(v4, w2, b2, 1)
    v6 = jnp.maximum(_conv_ref(v5, w3, b3, 0), 0.0)
    return v6


if __name__ == "__main__":
    key = jax.random.PRNGKey(0)
    k_x, k1, k2, k3, k4, k5, k6 = jax.random.split(key, 7)

    # Small shapes consistent with the module: (N=2, C=3, H=W=16)
    N, Cin, H, W = 2, 3, 16, 16
    x1 = jax.random.normal(k_x, (N, Cin, H, W), dtype=jnp.float32)

    # Deterministic parameter init (shapes from the Conv2d definitions)
    w1 = jax.random.normal(k1, (8, 3, 1, 1), dtype=jnp.float32) * 0.3
    b1 = jax.random.normal(k2, (8,), dtype=jnp.float32) * 0.1
    w2 = jax.random.normal(k3, (8, 8, 1, 1), dtype=jnp.float32) * 0.3
    b2 = jax.random.normal(k4, (8,), dtype=jnp.float32) * 0.1
    w3 = jax.random.normal(k5, (8, 8, 9, 9), dtype=jnp.float32) * 0.05
    b3 = jax.random.normal(k6, (8,), dtype=jnp.float32) * 0.1

    prepped = prepare_params(w1, b1, w2, b2, w3, b3, H, W)

    out = model_forward(x1, prepped)
    out = jax.block_until_ready(out)

    ref = _reference_forward(x1, (w1, b1, w2, b2, w3, b3))
    assert out.shape == ref.shape, (out.shape, ref.shape)
    max_err = float(jnp.max(jnp.abs(out - ref)))
    assert max_err < 2e-4, max_err

    print("KERNEL_OK")
</pallas_src>

<mosaic_0001>
module attributes {stable_mosaic.version = 11 : i64} {
  func.func @_fused_kernel(%arg0: i32, %arg1: memref<1x60x20xf32, #tpu.memory_space<vmem>>, %arg2: memref<160x60xf32, #tpu.memory_space<vmem>>, %arg3: memref<160x1xf32, #tpu.memory_space<vmem>>, %arg4: memref<160x20xf32, #tpu.memory_space<vmem>>, %arg5: memref<96x1440xf32, #tpu.memory_space<vmem>>, %arg6: memref<96x1xf32, #tpu.memory_space<vmem>>, %arg7: memref<1x96x12xf32, #tpu.memory_space<vmem>>, %arg8: memref<1440x12xf32, #tpu.memory_space<vmem>>) attributes {dimension_semantics = [#tpu.dimension_semantics<parallel>], iteration_bounds = array<i64: 2>, scalar_prefetch = 0 : i64, scratch_operands = 1 : i64, tpu.core_type = #tpu.core_type<tc>, window_params = [{transform_indices = @transform_0, window_bounds = array<i64: 1, 60, 20>}, {pipeline_mode = #tpu.pipeline_mode<synchronous>, transform_indices = @transform_1, window_bounds = array<i64: 160, 60>}, {pipeline_mode = #tpu.pipeline_mode<synchronous>, transform_indices = @transform_2, window_bounds = array<i64: 160, 1>}, {pipeline_mode = #tpu.pipeline_mode<synchronous>, transform_indices = @transform_3, window_bounds = array<i64: 160, 20>}, {pipeline_mode = #tpu.pipeline_mode<synchronous>, transform_indices = @transform_4, window_bounds = array<i64: 96, 1440>}, {pipeline_mode = #tpu.pipeline_mode<synchronous>, transform_indices = @transform_5, window_bounds = array<i64: 96, 1>}, {transform_indices = @transform_6, window_bounds = array<i64: 1, 96, 12>}]} {
    %c0 = arith.constant 0 : index
    %c0_0 = arith.constant 0 : index
    %c0_1 = arith.constant 0 : index
    %0 = vector.load %arg1[%c0, %c0_0, %c0_1] : memref<1x60x20xf32, #tpu.memory_space<vmem>>, vector<1x60x20xf32>
    %1 = vector.shape_cast %0 : vector<1x60x20xf32> to vector<60x20xf32>
    %c0_2 = arith.constant 0 : index
    %c0_3 = arith.constant 0 : index
    %2 = vector.load %arg2[%c0_2, %c0_3] : memref<160x60xf32, #tpu.memory_space<vmem>>, vector<160x60xf32>
    %cst = arith.constant dense<0.000000e+00> : vector<160x20xf32>
    %3 = tpu.matmul %2, %1, %cst {dimension_numbers = #tpu.dot_dimension_numbers<[1], [0], [0], [1], [0, 0, 1, 1], [], []>} : vector<160x60xf32>, vector<60x20xf32>, vector<160x20xf32> -> vector<160x20xf32>
    %c0_4 = arith.constant 0 : index
    %c0_5 = arith.constant 0 : index
    %4 = vector.load %arg3[%c0_4, %c0_5] : memref<160x1xf32, #tpu.memory_space<vmem>>, vector<160x1xf32>
    %5 = vector.broadcast %4 : vector<160x1xf32> to vector<160x20xf32>
    %6 = arith.addf %3, %5 : vector<160x20xf32>
    %7 = math.tanh %6 : vector<160x20xf32>
    %cst_6 = arith.constant 0.000000e+00 : f32
    %8 = vector.broadcast %cst_6 : f32 to vector<160x20xf32>
    %9 = arith.maximumf %7, %8 : vector<160x20xf32>
    %cst_7 = arith.constant 5.000000e-01 : f32
    %10 = vector.broadcast %cst_7 : f32 to vector<160x20xf32>
    %11 = arith.mulf %10, %9 : vector<160x20xf32>
    %cst_8 = arith.constant 1.500000e+00 : f32
    %12 = vector.broadcast %cst_8 : f32 to vector<160x20xf32>
    %13 = arith.subf %12, %11 : vector<160x20xf32>
    %c0_9 = arith.constant 0 : index
    %c0_10 = arith.constant 0 : index
    %14 = vector.load %arg4[%c0_9, %c0_10] : memref<160x20xf32, #tpu.memory_space<vmem>>, vector<160x20xf32>
    %15 = arith.mulf %13, %14 : vector<160x20xf32>
    %16 = vector.extract_strided_slice %15 {offsets = [0, 0], sizes = [160, 12], strides = [1, 1]} : vector<160x20xf32> to vector<160x12xf32>
    %c0_11 = arith.constant 0 : index
    %c0_12 = arith.constant 0 : index
    %17 = vector.load %arg8[%c0_11, %c0_12] : memref<1440x12xf32, #tpu.memory_space<vmem>>, vector<160x12xf32>
    tpu.vector_store %arg8[%c0_11, %c0_12], %16 {strides = array<i32>} : memref<1440x12xf32, #tpu.memory_space<vmem>>, vector<160x12xf32>,
    %18 = vector.extract_strided_slice %15 {offsets = [0, 1], sizes = [160, 12], strides = [1, 1]} : vector<160x20xf32> to vector<160x12xf32>
    %c160 = arith.constant 160 : index
    %c0_13 = arith.constant 0 : index
    %19 = vector.load %arg8[%c160, %c0_13] : memref<1440x12xf32, #tpu.memory_space<vmem>>, vector<160x12xf32>
    tpu.vector_store %arg8[%c160, %c0_13], %18 {strides = array<i32>} : memref<1440x12xf32, #tpu.memory_space<vmem>>, vector<160x12xf32>,
    %20 = vector.extract_strided_slice %15 {offsets = [0, 2], sizes = [160, 12], strides = [1, 1]} : vector<160x20xf32> to vector<160x12xf32>
    %c320 = arith.constant 320 : index
    %c0_14 = arith.constant 0 : index
    %21 = vector.load %arg8[%c320, %c0_14] : memref<1440x12xf32, #tpu.memory_space<vmem>>, vector<160x12xf32>
    tpu.vector_store %arg8[%c320, %c0_14], %20 {strides = array<i32>} : memref<1440x12xf32, #tpu.memory_space<vmem>>, vector<160x12xf32>,
    %22 = vector.extract_strided_slice %15 {offsets = [0, 3], sizes = [160, 12], strides = [1, 1]} : vector<160x20xf32> to vector<160x12xf32>
    %c480 = arith.constant 480 : index
    %c0_15 = arith.constant 0 : index
    %23 = vector.load %arg8[%c480, %c0_15] : memref<1440x12xf32, #tpu.memory_space<vmem>>, vector<160x12xf32>
    tpu.vector_store %arg8[%c480, %c0_15], %22 {strides = array<i32>} : memref<1440x12xf32, #tpu.memory_space<vmem>>, vector<160x12xf32>,
    %24 = vector.extract_strided_slice %15 {offsets = [0, 4], sizes = [160, 12], strides = [1, 1]} : vector<160x20xf32> to vector<160x12xf32>
    %c640 = arith.constant 640 : index
    %c0_16 = arith.constant 0 : index
    %25 = vector.load %arg8[%c640, %c0_16] : memref<1440x12xf32, #tpu.memory_space<vmem>>, vector<160x12xf32>
    tpu.vector_store %arg8[%c640, %c0_16], %24 {strides = array<i32>} : memref<1440x12xf32, #tpu.memory_space<vmem>>, vector<160x12xf32>,
    %26 = vector.extract_strided_slice %15 {offsets = [0, 5], sizes = [160, 12], strides = [1, 1]} : vector<160x20xf32> to vector<160x12xf32>
    %c800 = arith.constant 800 : index
    %c0_17 = arith.constant 0 : index
    %27 = vector.load %arg8[%c800, %c0_17] : memref<1440x12xf32, #tpu.memory_space<vmem>>, vector<160x12xf32>
    tpu.vector_store %arg8[%c800, %c0_17], %26 {strides = array<i32>} : memref<1440x12xf32, #tpu.memory_space<vmem>>, vector<160x12xf32>,
    %28 = vector.extract_strided_slice %15 {offsets = [0, 6], sizes = [160, 12], strides = [1, 1]} : vector<160x20xf32> to vector<160x12xf32>
    %c960 = arith.constant 960 : index
    %c0_18 = arith.constant 0 : index
    %29 = vector.load %arg8[%c960, %c0_18] : memref<1440x12xf32, #tpu.memory_space<vmem>>, vector<160x12xf32>
    tpu.vector_store %arg8[%c960, %c0_18], %28 {strides = array<i32>} : memref<1440x12xf32, #tpu.memory_space<vmem>>, vector<160x12xf32>,
    %30 = vector.extract_strided_slice %15 {offsets = [0, 7], sizes = [160, 12], strides = [1, 1]} : vector<160x20xf32> to vector<160x12xf32>
    %c1120 = arith.constant 1120 : index
    %c0_19 = arith.constant 0 : index
    %31 = vector.load %arg8[%c1120, %c0_19] : memref<1440x12xf32, #tpu.memory_space<vmem>>, vector<160x12xf32>
    tpu.vector_store %arg8[%c1120, %c0_19], %30 {strides = array<i32>} : memref<1440x12xf32, #tpu.memory_space<vmem>>, vector<160x12xf32>,
    %32 = vector.extract_strided_slice %15 {offsets = [0, 8], sizes = [160, 12], strides = [1, 1]} : vector<160x20xf32> to vector<160x12xf32>
    %c1280 = arith.constant 1280 : index
    %c0_20 = arith.constant 0 : index
    %33 = vector.load %arg8[%c1280, %c0_20] : memref<1440x12xf32, #tpu.memory_space<vmem>>, vector<160x12xf32>
    tpu.vector_store %arg8[%c1280, %c0_20], %32 {strides = array<i32>} : memref<1440x12xf32, #tpu.memory_space<vmem>>, vector<160x12xf32>,
    %c0_21 = arith.constant 0 : index
    %c0_22 = arith.constant 0 : index
    %34 = vector.load %arg5[%c0_21, %c0_22] : memref<96x1440xf32, #tpu.memory_space<vmem>>, vector<96x1440xf32>
    %c0_23 = arith.constant 0 : index
    %c0_24 = arith.constant 0 : index
    %35 = vector.load %arg8[%c0_23, %c0_24] : memref<1440x12xf32, #tpu.memory_space<vmem>>, vector<1440x12xf32>
    %cst_25 = arith.constant dense<0.000000e+00> : vector<96x12xf32>
    %36 = tpu.matmul %34, %35, %cst_25 {dimension_numbers = #tpu.dot_dimension_numbers<[1], [0], [0], [1], [0, 0, 1, 1], [], []>} : vector<96x1440xf32>, vector<1440x12xf32>, vector<96x12xf32> -> vector<96x12xf32>
    %c0_26 = arith.constant 0 : index
    %c0_27 = arith.constant 0 : index
    %37 = vector.load %arg6[%c0_26, %c0_27] : memref<96x1xf32, #tpu.memory_space<vmem>>, vector<96x1xf32>
    %38 = vector.broadcast %37 : vector<96x1xf32> to vector<96x12xf32>
    %39 = arith.addf %36, %38 : vector<96x12xf32>
    %cst_28 = arith.constant 0.000000e+00 : f32
    %40 = vector.broadcast %cst_28 : f32 to vector<96x12xf32>
    %41 = arith.maximumf %39, %40 : vector<96x12xf32>
    %c0_29 = arith.constant 0 : index
    %c0_30 = arith.constant 0 : index
    %c0_31 = arith.constant 0 : index
    %42 = vector.load %arg7[%c0_29, %c0_30, %c0_31] : memref<1x96x12xf32, #tpu.memory_space<vmem>>, vector<1x96x12xf32>
    %43 = vector.shape_cast %42 : vector<1x96x12xf32> to vector<96x12xf32>
    %44 = vector.shape_cast %41 : vector<96x12xf32> to vector<1x96x12xf32>
    tpu.vector_store %arg7[%c0_29, %c0_30, %c0_31], %44 {strides = array<i32>} : memref<1x96x12xf32, #tpu.memory_space<vmem>>, vector<1x96x12xf32>,
    return
  }
  func.func @transform_0(%arg0: i32) -> (i32, i32, i32) {
    %c0_i32 = arith.constant 0 : i32
    %c0_i32_0 = arith.constant 0 : i32
    %c0_i32_1 = arith.constant 0 : i32
    return %arg0, %c0_i32, %c0_i32_0 : i32, i32, i32
  }
  func.func @transform_1(%arg0: i32) -> (i32, i32) {
    %c0_i32 = arith.constant 0 : i32
    %c0_i32_0 = arith.constant 0 : i32
    %c0_i32_1 = arith.constant 0 : i32
    return %c0_i32, %c0_i32_0 : i32, i32
  }
  func.func @transform_2(%arg0: i32) -> (i32, i32) {
    %c0_i32 = arith.constant 0 : i32
    %c0_i32_0 = arith.constant 0 : i32
    %c0_i32_1 = arith.constant 0 : i32
    return %c0_i32, %c0_i32_0 : i32, i32
  }
  func.func @transform_3(%arg0: i32) -> (i32, i32) {
    %c0_i32 = arith.constant 0 : i32
    %c0_i32_0 = arith.constant 0 : i32
    %c0_i32_1 = arith.constant 0 : i32
    return %c0_i32, %c0_i32_0 : i32, i32
  }
  func.func @transform_4(%arg0: i32) -> (i32, i32) {
    %c0_i32 = arith.constant 0 : i32
    %c0_i32_0 = arith.constant 0 : i32
    %c0_i32_1 = arith.constant 0 : i32
    return %c0_i32, %c0_i32_0 : i32, i32
  }
  func.func @transform_5(%arg0: i32) -> (i32, i32) {
    %c0_i32 = arith.constant 0 : i32
    %c0_i32_0 = arith.constant 0 : i32
    %c0_i32_1 = arith.constant 0 : i32
    return %c0_i32, %c0_i32_0 : i32, i32
  }
  func.func @transform_6(%arg0: i32) -> (i32, i32, i32) {
    %c0_i32 = arith.constant 0 : i32
    %c0_i32_0 = arith.constant 0 : i32
    %c0_i32_1 = arith.constant 0 : i32
    return %arg0, %c0_i32, %c0_i32_0 : i32, i32, i32
  }
}

</mosaic_0001>

<llo_original>
// kernel: model_forward.1
$region0: #{model_forward.1}
  #allocation0 [shape = 'u32[]', space=smem, size = 0x4, offset = 0x4, fixed_abs, tag = 'smem constant byte address 0x4 - core index']
  #allocation1 [shape = 'u32[144,128]{1,0:T(1,128)}', space=vmem, size = 0x12000, scoped, tag = 'internal scratch']
  #allocation2 [shape = 'f32[1440,12]{1,0:T(8,128)}', space=vmem, size = 0xb4000, scoped, tag = 'scratch operand']
  %s0 = inlined_call_operand.vmem [shape: f32[2,60,20], index: 0, kind: input, shape index: {}]
  %s1 = inlined_call_operand.vmem [shape: f32[160,60], index: 1, kind: input, shape index: {}]
  %s2 = inlined_call_operand.vmem [shape: f32[160,1], index: 2, kind: input, shape index: {}]
  %s3 = inlined_call_operand.vmem [shape: f32[160,20], index: 3, kind: input, shape index: {}]
  %s4 = inlined_call_operand.vmem [shape: f32[96,1440], index: 4, kind: input, shape index: {}]
  %s5 = inlined_call_operand.vmem [shape: f32[96,1], index: 5, kind: input, shape index: {}]
  %s6 = inlined_call_operand.vmem [shape: f32[2,96,12], index: 6, kind: output, shape index: {}]
  %s7 = sld [smem:[#allocation0]]
  $region57: #{model_forward.1} parent=0
    _
  %s9 = ssub.s32 1, %s7
  %s10 = scalar_select 0, %s9, %s7
  loop: start=0, step=1, limit=4
  $region2: #{model_forward.1} parent=0 // loop_pre_header
    _
  $region3: #{model_forward.1} parent=0 // loop_header
    %s12 = sphi 0, %s16
    %p13 = scmp.ge.s32.totalorder %s12, 4
    %s22 = sphi 0, %s24
    %s25 = sphi 0, %s22
    %s26 = sphi 0, %s25
    %s42 = sphi 0, %s26
    %s46 = sphi 0, %s46
    %s48 = sphi 0, %s46
    %s49 = sphi 0, %s48
    %s63 = sphi 0, %s49
    %s67 = sphi 0, %s67
    %s69 = sphi 0, %s67
    %s70 = sphi 0, %s69
    %s84 = sphi 0, %s70
    %s88 = sphi 0, %s88
    %s90 = sphi 0, %s88
    %s91 = sphi 0, %s90
    %s105 = sphi 0, %s91
    %s109 = sphi 0, %s109
    %s111 = sphi 0, %s109
    %s112 = sphi 0, %s111
    %s126 = sphi 0, %s112
    %s130 = sphi 0, %s130
    %s132 = sphi 0, %s130
    %s133 = sphi 0, %s132
    %s147 = sphi 0, %s133
    %s153 = sphi 0, %s155
    %s156 = sphi 0, %s153
    %s157 = sphi 0, %s156
    %s173 = sphi 0, %s157
  $region4: #{model_forward.1} parent=0 // loop_header_branch
    %15 = sbr.rel (%p13) target = $region8
  $region5: #{model_forward.1} parent=0 // loop_body
    %s17 = ssub.s32 %s12, 1
    %s18 = ssub.s32 %s12, 2
    %s19 = sadd.s32 %s12, 1
    %s20 = ssub.s32 %s12, %s19
    %p21 = scmp.eq.s32.totalorder %s20, 0
    %s23 = sadd.s32 %s22, 1
    %s24 = scalar_select %p21, %s22, %s23
    %p27 = pneg %p21
    %p28 = scmp.eq.s32.totalorder %s12, 1
    %p29 = por %p27, %p28
    %p30 = scmp.ne.s32.totalorder %s22, %s25
    %p31 = scmp.eq.s32.totalorder %s12, 0
    %p32 = por %p30, %p31
    %p33 = scmp.ne.s32.totalorder %s22, %s25
    %p34 = scmp.eq.s32.totalorder %s17, 1
    %p35 = por %p33, %p34
    %p36 = scmp.ne.s32.totalorder %s25, %s26
    %p37 = scmp.eq.s32.totalorder %s17, 0
    %p38 = por %p36, %p37
    %p39 = scmp.ne.s32.totalorder %s25, %s26
    %p40 = scmp.eq.s32.totalorder %s18, 1
    %p41 = por %p39, %p40
    %p43 = scmp.ne.s32.totalorder %s26, %s42
    %p44 = scmp.eq.s32.totalorder %s18, 0
    %p45 = por %p43, %p44
    %s47 = sadd.s32 %s46, 1
    %p50 = scmp.eq.s32.totalorder %s12, 1
    %p51 = scmp.ne.s32.totalorder %s46, %s48
    %p52 = scmp.eq.s32.totalorder %s12, 0
    %p53 = por %p51, %p52
    %p54 = scmp.ne.s32.totalorder %s46, %s48
    %p55 = scmp.eq.s32.totalorder %s17, 1
    %p56 = por %p54, %p55
    %p57 = scmp.ne.s32.totalorder %s48, %s49
    %p58 = scmp.eq.s32.totalorder %s17, 0
    %p59 = por %p57, %p58
    %p60 = scmp.ne.s32.totalorder %s48, %s49
    %p61 = scmp.eq.s32.totalorder %s18, 1
    %p62 = por %p60, %p61
    %p64 = scmp.ne.s32.totalorder %s49, %s63
    %p65 = scmp.eq.s32.totalorder %s18, 0
    %p66 = por %p64, %p65
    %s68 = sadd.s32 %s67, 1
    %p71 = scmp.eq.s32.totalorder %s12, 1
    %p72 = scmp.ne.s32.totalorder %s67, %s69
    %p73 = scmp.eq.s32.totalorder %s12, 0
    %p74 = por %p72, %p73
    %p75 = scmp.ne.s32.totalorder %s67, %s69
    %p76 = scmp.eq.s32.totalorder %s17, 1
    %p77 = por %p75, %p76
    %p78 = scmp.ne.s32.totalorder %s69, %s70
    %p79 = scmp.eq.s32.totalorder %s17, 0
    %p80 = por %p78, %p79
    %p81 = scmp.ne.s32.totalorder %s69, %s70
    %p82 = scmp.eq.s32.totalorder %s18, 1
    %p83 = por %p81, %p82
    %p85 = scmp.ne.s32.totalorder %s70, %s84
    %p86 = scmp.eq.s32.totalorder %s18, 0
    %p87 = por %p85, %p86
    %s89 = sadd.s32 %s88, 1
    %p92 = scmp.eq.s32.totalorder %s12, 1
    %p93 = scmp.ne.s32.totalorder %s88, %s90
    %p94 = scmp.eq.s32.totalorder %s12, 0
    %p95 = por %p93, %p94
    %p96 = scmp.ne.s32.totalorder %s88, %s90
    %p97 = scmp.eq.s32.totalorder %s17, 1
    %p98 = por %p96, %p97
    %p99 = scmp.ne.s32.totalorder %s90, %s91
    %p100 = scmp.eq.s32.totalorder %s17, 0
    %p101 = por %p99, %p100
    %p102 = scmp.ne.s32.totalorder %s90, %s91
    %p103 = scmp.eq.s32.totalorder %s18, 1
    %p104 = por %p102, %p103
    %p106 = scmp.ne.s32.totalorder %s91, %s105
    %p107 = scmp.eq.s32.totalorder %s18, 0
    %p108 = por %p106, %p107
    %s110 = sadd.s32 %s109, 1
    %p113 = scmp.eq.s32.totalorder %s12, 1
    %p114 = scmp.ne.s32.totalorder %s109, %s111
    %p115 = scmp.eq.s32.totalorder %s12, 0
    %p116 = por %p114, %p115
    %p117 = scmp.ne.s32.totalorder %s109, %s111
    %p118 = scmp.eq.s32.totalorder %s17, 1
    %p119 = por %p117, %p118
    %p120 = scmp.ne.s32.totalorder %s111, %s112
    %p121 = scmp.eq.s32.totalorder %s17, 0
    %p122 = por %p120, %p121
    %p123 = scmp.ne.s32.totalorder %s111, %s112
    %p124 = scmp.eq.s32.totalorder %s18, 1
    %p125 = por %p123, %p124
    %p127 = scmp.ne.s32.totalorder %s112, %s126
    %p128 = scmp.eq.s32.totalorder %s18, 0
    %p129 = por %p127, %p128
    %s131 = sadd.s32 %s130, 1
    %p134 = scmp.eq.s32.totalorder %s12, 1
    %p135 = scmp.ne.s32.totalorder %s130, %s132
    %p136 = scmp.eq.s32.totalorder %s12, 0
    %p137 = por %p135, %p136
    %p138 = scmp.ne.s32.totalorder %s130, %s132
    %p139 = scmp.eq.s32.totalorder %s17, 1
    %p140 = por %p138, %p139
    %p141 = scmp.ne.s32.totalorder %s132, %s133
    %p142 = scmp.eq.s32.totalorder %s17, 0
    %p143 = por %p141, %p142
    %p144 = scmp.ne.s32.totalorder %s132, %s133
    %p145 = scmp.eq.s32.totalorder %s18, 1
    %p146 = por %p144, %p145
    %p148 = scmp.ne.s32.totalorder %s133, %s147
    %p149 = scmp.eq.s32.totalorder %s18, 0
    %p150 = por %p148, %p149
    %s151 = ssub.s32 %s12, %s19
    %p152 = scmp.eq.s32.totalorder %s151, 0
    %s154 = sadd.s32 %s153, 1
    %s155 = scalar_select %p152, %s153, %s154
    %p158 = pneg %p152
    %p159 = scmp.eq.s32.totalorder %s12, 1
    %p160 = por %p158, %p159
    %p161 = scmp.ne.s32.totalorder %s153, %s156
    %p162 = scmp.eq.s32.totalorder %s12, 0
    %p163 = por %p161, %p162
    %p164 = scmp.ne.s32.totalorder %s153, %s156
    %p165 = scmp.eq.s32.totalorder %s17, 1
    %p166 = por %p164, %p165
    %p167 = scmp.ne.s32.totalorder %s156, %s157
    %p168 = scmp.eq.s32.totalorder %s17, 0
    %p169 = por %p167, %p168
    %p170 = scmp.ne.s32.totalorder %s156, %s157
    %p171 = scmp.eq.s32.totalorder %s18, 1
    %p172 = por %p170, %p171
    %p174 = scmp.ne.s32.totalorder %s157, %s173
    %p175 = scmp.eq.s32.totalorder %s18, 0
    %p176 = por %p174, %p175
    %p177 = scmp.le.s32.totalorder 1, %s12
    %p178 = scmp.lt.s32.totalorder %s12, 3
    %p179 = pnand %p177, %p178
    %p180 = pneg %p179
    // Predicated region
    $region9: #{model_forward.1} parent=5 // pred_check
      _
    $region10: #{model_forward.1} parent=5 // pred_check_branch
      %182 = sbr.rel (%p179) target = $region12
    $region11: #{model_forward.1} parent=5 // pred_region
      %s183 = ssub.s32 %s12, 1
      // Predicated region
      $region13: #{model_forward.1} parent=11 // pred_check
        %p184 = pneg %p59
      $region14: #{model_forward.1} parent=11 // pred_check_branch
        %186 = sbr.rel (%p184) target = $region16
      $region15: #{model_forward.1} parent=11 // pred_region
        _
      $region16: #{model_forward.1} parent=11 // pred_fallthru
        _
      // Predicated region
      $region17: #{model_forward.1} parent=11 // pred_check
        %p187 = pneg %p80
      $region18: #{model_forward.1} parent=11 // pred_check_branch
        %189 = sbr.rel (%p187) target = $region20
      $region19: #{model_forward.1} parent=11 // pred_region
        _
      $region20: #{model_forward.1} parent=11 // pred_fallthru
        _
      // Predicated region
      $region21: #{model_forward.1} parent=11 // pred_check
        %p190 = pneg %p101
      $region22: #{model_forward.1} parent=11 // pred_check_branch
        %192 = sbr.rel (%p190) target = $region24
      $region23: #{model_forward.1} parent=11 // pred_region
        _
      $region24: #{model_forward.1} parent=11 // pred_fallthru
        _
      // Predicated region
      $region25: #{model_forward.1} parent=11 // pred_check
        %p193 = pneg %p122
      $region26: #{model_forward.1} parent=11 // pred_check_branch
        %195 = sbr.rel (%p193) target = $region28
      $region27: #{model_forward.1} parent=11 // pred_region
        _
      $region28: #{model_forward.1} parent=11 // pred_fallthru
        _
      // Predicated region
      $region29: #{model_forward.1} parent=11 // pred_check
        %p196 = pneg %p143
      $region30: #{model_forward.1} parent=11 // pred_check_branch
        %198 = sbr.rel (%p196) target = $region32
      $region31: #{model_forward.1} parent=11 // pred_region
        _
      $region32: #{model_forward.1} parent=11 // pred_fallthru
        _
    $region12: #{model_forward.1} parent=5 // pred_fallthru
      _
    %p199 = scmp.lt.s32.totalorder %s12, 2
    // Predicated region
    $region33: #{model_forward.1} parent=5 // pred_check
      %p200 = pneg %p199
    $region34: #{model_forward.1} parent=5 // pred_check_branch
      %202 = sbr.rel (%p200) target = $region36
    $region35: #{model_forward.1} parent=5 // pred_region
      // Predicated region
      $region37: #{model_forward.1} parent=35 // pred_check
        %p203 = pneg %p32
      $region38: #{model_forward.1} parent=35 // pred_check_branch
        %205 = sbr.rel (%p203) target = $region40
      $region39: #{model_forward.1} parent=35 // pred_region
        %p206 = scmp.lt.s32.totalorder %s12, 1
        %s207 = scalar_select %p206, %s12, 1
        %s208 = smul.addr %s207, 8
        %s209 = smul.addr %s208, 8
        %s210 = scalar_lea.vmem %s0, %s209
      $region40: #{model_forward.1} parent=35 // pred_fallthru
        _
    $region36: #{model_forward.1} parent=5 // pred_fallthru
      _
    %p211 = scmp.le.s32.totalorder 1, %s12
    %p212 = scmp.lt.s32.totalorder %s12, 3
    %p213 = pnand %p211, %p212
    %p214 = pneg %p213
    // Predicated region
    $region41: #{model_forward.1} parent=5 // pred_check
      _
    $region42: #{model_forward.1} parent=5 // pred_check_branch
      %216 = sbr.rel (%p213) target = $region44
    $region43: #{model_forward.1} parent=5 // pred_region
      %s217 = ssub.s32 %s12, 1
      %p218 = scmp.lt.s32.totalorder %s17, 1
      %s219 = scalar_select %p218, %s17, 1
      %s220 = smul.addr %s219, 8
      %s221 = smul.addr %s220, 8
      %s222 = scalar_lea.vmem %s0, %s221
      %p223 = pneg %p38
      %p224 = pneg %p35
      %p225 = pneg %p59
      %p226 = pneg %p56
      %p227 = pneg %p80
      %p228 = pneg %p77
      %p229 = pneg %p101
      %p230 = pneg %p98
      %p231 = pneg %p122
      %p232 = pneg %p119
      %p233 = pneg %p143
      %p234 = pneg %p140
      %p235 = pneg %p169
      %p236 = pneg %p166
      %p237 = scmp.lt.s32.totalorder %s17, 1
      %s238 = scalar_select %p237, %s17, 1
      %s239 = smul.addr %s238, 12
      %s240 = smul.addr %s239, 8
      %s241 = scalar_lea.vmem %s6, %s240
      %p242 = scmp.lt.s32.totalorder %s17, 1
      %s243 = scalar_select %p242, %s17, 1
      %s244 = smul.addr %s243, 8
      %s245 = smul.addr %s244, 8
      %s246 = scalar_lea.vmem %s0, %s245
      %p247 = scmp.lt.s32.totalorder %s17, 1
      %s248 = scalar_select %p247, %s17, 1
      %s249 = smul.addr %s248, 12
      %s250 = smul.addr %s249, 8
      %s251 = scalar_lea.vmem %s6, %s250
      %v252 = vld [vmem:[%s246] sm:$0xff]
      %v253 = vld [vmem:[%s246 + $0x8] sm:$0xff]
      %v254 = vld [vmem:[%s246 + $0x10] sm:$0xff]
      %v255 = vld [vmem:[%s246 + $0x18] sm:$0xff]
      %v256 = vld [vmem:[%s246 + $0x20] sm:$0xff]
      %v257 = vld [vmem:[%s246 + $0x28] sm:$0xff]
      %v258 = vld [vmem:[%s246 + $0x30] sm:$0xff]
      %v259 = vld [vmem:[%s246 + $0x38] sm:$0xf]
      %v260 = vld [vmem:[%s1] sm:$0xff]
      %v261 = vld [vmem:[%s1 + $0x8] sm:$0xff]
      %v262 = vld [vmem:[%s1 + $0x10] sm:$0xff]
      %v263 = vld [vmem:[%s1 + $0x18] sm:$0xff]
      %v264 = vld [vmem:[%s1 + $0x20] sm:$0xff]
      %v265 = vld [vmem:[%s1 + $0x28] sm:$0xff]
      %v266 = vld [vmem:[%s1 + $0x30] sm:$0xff]
      %v267 = vld [vmem:[%s1 + $0x38] sm:$0xff]
      %v268 = vld [vmem:[%s1 + $0x40] sm:$0xff]
      %v269 = vld [vmem:[%s1 + $0x48] sm:$0xff]
      %v270 = vld [vmem:[%s1 + $0x50] sm:$0xff]
      %v271 = vld [vmem:[%s1 + $0x58] sm:$0xff]
      %v272 = vld [vmem:[%s1 + $0x60] sm:$0xff]
      %v273 = vld [vmem:[%s1 + $0x68] sm:$0xff]
      %v274 = vld [vmem:[%s1 + $0x70] sm:$0xff]
      %v275 = vld [vmem:[%s1 + $0x78] sm:$0xff]
      %v276 = vld [vmem:[%s1 + $0x80] sm:$0xff]
      %v277 = vld [vmem:[%s1 + $0x88] sm:$0xff]
      %v278 = vld [vmem:[%s1 + $0x90] sm:$0xff]
      %v279 = vld [vmem:[%s1 + $0x98] sm:$0xff]
      %v280 = vld [vmem:[%s2] sm:$0xff]
      %v281 = vld [vmem:[%s2 + $0x8] sm:$0xff]
      %v282 = vld [vmem:[%s2 + $0x10] sm:$0xff]
      %v283 = vld [vmem:[%s2 + $0x18] sm:$0xff]
      %v284 = vld [vmem:[%s2 + $0x20] sm:$0xff]
      %v285 = vld [vmem:[%s2 + $0x28] sm:$0xff]
      %v286 = vld [vmem:[%s2 + $0x30] sm:$0xff]
      %v287 = vld [vmem:[%s2 + $0x38] sm:$0xff]
      %v288 = vld [vmem:[%s2 + $0x40] sm:$0xff]
      %v289 = vld [vmem:[%s2 + $0x48] sm:$0xff]
      %v290 = vld [vmem:[%s2 + $0x50] sm:$0xff]
      %v291 = vld [vmem:[%s2 + $0x58] sm:$0xff]
      %v292 = vld [vmem:[%s2 + $0x60] sm:$0xff]
      %v293 = vld [vmem:[%s2 + $0x68] sm:$0xff]
      %v294 = vld [vmem:[%s2 + $0x70] sm:$0xff]
      %v295 = vld [vmem:[%s2 + $0x78] sm:$0xff]
      %v296 = vld [vmem:[%s2 + $0x80] sm:$0xff]
      %v297 = vld [vmem:[%s2 + $0x88] sm:$0xff]
      %v298 = vld [vmem:[%s2 + $0x90] sm:$0xff]
      %v299 = vld [vmem:[%s2 + $0x98] sm:$0xff]
      %301 = vset.pattern.permute.xlu0 0
      %302 = vperm.xlu0 %301, %v280
      %v303 = vpop.permute.xlu0 %302
      %306 = vset.pattern.permute.xlu0 0
      %307 = vperm.xlu0 %306, %v281
      %v308 = vpop.permute.xlu0 %307
      %311 = vset.pattern.permute.xlu0 0
      %312 = vperm.xlu0 %311, %v282
      %v313 = vpop.permute.xlu0 %312
      %316 = vset.pattern.permute.xlu0 0
      %317 = vperm.xlu0 %316, %v283
      %v318 = vpop.permute.xlu0 %317
      %321 = vset.pattern.permute.xlu0 0
      %322 = vperm.xlu0 %321, %v284
      %v323 = vpop.permute.xlu0 %322
      %326 = vset.pattern.permute.xlu0 0
      %327 = vperm.xlu0 %326, %v285
      %v328 = vpop.permute.xlu0 %327
      %331 = vset.pattern.permute.xlu0 0
      %332 = vperm.xlu0 %331, %v286
      %v333 = vpop.permute.xlu0 %332
      %336 = vset.pattern.permute.xlu0 0
      %337 = vperm.xlu0 %336, %v287
      %v338 = vpop.permute.xlu0 %337
      %341 = vset.pattern.permute.xlu0 0
      %342 = vperm.xlu0 %341, %v288
      %v343 = vpop.permute.xlu0 %342
      %346 = vset.pattern.permute.xlu0 0
      %347 = vperm.xlu0 %346, %v289
      %v348 = vpop.permute.xlu0 %347
      %351 = vset.pattern.permute.xlu0 0
      %352 = vperm.xlu0 %351, %v290
      %v353 = vpop.permute.xlu0 %352
      %356 = vset.pattern.permute.xlu0 0
      %357 = vperm.xlu0 %356, %v291
      %v358 = vpop.permute.xlu0 %357
      %361 = vset.pattern.permute.xlu0 0
      %362 = vperm.xlu0 %361, %v292
      %v363 = vpop.permute.xlu0 %362
      %366 = vset.pattern.permute.xlu0 0
      %367 = vperm.xlu0 %366, %v293
      %v368 = vpop.permute.xlu0 %367
      %371 = vset.pattern.permute.xlu0 0
      %372 = vperm.xlu0 %371, %v294
      %v373 = vpop.permute.xlu0 %372
      %376 = vset.pattern.permute.xlu0 0
      %377 = vperm.xlu0 %376, %v295
      %v378 = vpop.permute.xlu0 %377
      %381 = vset.pattern.permute.xlu0 0
      %382 = vperm.xlu0 %381, %v296
      %v383 = vpop.permute.xlu0 %382
      %386 = vset.pattern.permute.xlu0 0
      %387 = vperm.xlu0 %386, %v297
      %v388 = vpop.permute.xlu0 %387
      %391 = vset.pattern.permute.xlu0 0
      %392 = vperm.xlu0 %391, %v298
      %v393 = vpop.permute.xlu0 %392
      %396 = vset.pattern.permute.xlu0 0
      %397 = vperm.xlu0 %396, %v299
      %v398 = vpop.permute.xlu0 %397
      %vm400 = vcmask 490496
      %v402 = vsel %vm400, %v260, 0
      %v405 = vsel %vm400, %v261, 0
      %v408 = vsel %vm400, %v262, 0
      %v411 = vsel %vm400, %v263, 0
      %v414 = vsel %vm400, %v264, 0
      %v417 = vsel %vm400, %v265, 0
      %v420 = vsel %vm400, %v266, 0
      %v423 = vsel %vm400, %v267, 0
      %v426 = vsel %vm400, %v268, 0
      %v429 = vsel %vm400, %v269, 0
      %v432 = vsel %vm400, %v270, 0
      %v435 = vsel %vm400, %v271, 0
      %v438 = vsel %vm400, %v272, 0
      %v441 = vsel %vm400, %v273, 0
      %v444 = vsel %vm400, %v274, 0
      %v447 = vsel %vm400, %v275, 0
      %v450 = vsel %vm400, %v276, 0
      %v453 = vsel %vm400, %v277, 0
      %v456 = vsel %vm400, %v278, 0
      %v459 = vsel %vm400, %v279, 0
      %vm461 = vcmask 1043456
      %v463 = vsel %vm461, %v259, 0
      %465 = vmatprep.subr.mxu0 0.0
      %466 = vmatpush1.msra.mxu0 %v252
      %467 = vmatprep.subr.mxu0 0.0
      %468 = vmatpush1.msra.mxu0 %v253
      %469 = vmatprep.subr.mxu0 0.0
      %470 = vmatpush1.msra.mxu0 %v254
      %471 = vmatprep.subr.mxu0 0.0
      %472 = vmatpush1.msra.mxu0 %v255
      %473 = vmatprep.subr.mxu0 0.0
      %474 = vmatpush1.msra.mxu0 %v256
      %475 = vmatprep.subr.mxu0 0.0
      %476 = vmatpush1.msra.mxu0 %v257
      %477 = vmatprep.subr.mxu0 0.0
      %478 = vmatpush1.msra.mxu0 %v258
      %479 = vmatprep.subr.mxu0 0.0
      %480 = vmatpush1.msra.mxu0 %v463
      %481 = vmatprep.subr.mxu0 0.0
      %482 = vmatpush1.msra.mxu0 0.0
      %483 = vmatprep.subr.mxu0 0.0
      %484 = vmatpush1.msra.mxu0 0.0
      %485 = vmatprep.subr.mxu0 0.0
      %486 = vmatpush1.msra.mxu0 0.0
      %487 = vmatprep.subr.mxu0 0.0
      %488 = vmatpush1.msra.mxu0 0.0
      %489 = vmatprep.subr.mxu0 0.0
      %490 = vmatpush1.msra.mxu0 0.0
      %491 = vmatprep.subr.mxu0 0.0
      %492 = vmatpush1.msra.mxu0 0.0
      %493 = vmatprep.subr.mxu0 0.0
      %494 = vmatpush1.msra.mxu0 0.0
      %495 = vmatprep.subr.mxu0 0.0
      %496 = vmatpush1.msra.mxu0 0.0
      %497 = vmatprep.subr.mxu0 0.0
      %498 = vmatpush1.msra.mxu0 0.0
      %499 = vmatprep.subr.mxu0 0.0
      %500 = vmatpush1.msra.mxu0 0.0
      %501 = vmatprep.subr.mxu0 0.0
      %502 = vmatpush1.msra.mxu0 0.0
      %503 = vmatprep.subr.mxu0 0.0
      %504 = vmatpush1.msra.mxu0 0.0
      %505 = vmatprep.subr.mxu0 0.0
      %506 = vmatpush1.msra.mxu0 0.0
      %507 = vmatprep.subr.mxu0 0.0
      %508 = vmatpush1.msra.mxu0 0.0
      %509 = vmatprep.subr.mxu0 0.0
      %510 = vmatpush1.msra.mxu0 0.0
      %511 = vmatprep.subr.mxu0 0.0
      %512 = vmatpush1.msra.mxu0 0.0
      %513 = vmatprep.subr.mxu0 0.0
      %514 = vmatpush1.msra.mxu0 0.0
      %515 = vmatprep.subr.mxu0 0.0
      %516 = vmatpush1.msra.mxu0 0.0
      %517 = vmatprep.subr.mxu0 0.0
      %518 = vmatpush1.msra.mxu0 0.0
      %519 = vmatprep.subr.mxu0 0.0
      %520 = vmatpush1.msra.mxu0 0.0
      %521 = vmatprep.subr.mxu0 0.0
      %522 = vmatpush1.msra.mxu0 0.0
      %523 = vmatprep.subr.mxu0 0.0
      %524 = vmatpush1.msra.mxu0 0.0
      %525 = vmatprep.subr.mxu0 0.0
      %526 = vmatpush1.msra.mxu0 0.0
      %527 = vmatprep.subr.mxu0 0.0
      %528 = vmatpush1.msra.mxu0 0.0
      %529 = vmatprep.mubr.f32.mxu0 0.0
      %530 = vmatmul.mubr.f32.gmra.mrb[0].mxu0 %v402
      %v531 = vpop.f32.mrb[0].mxu0
      %v532 = vadd.f32 %v303, %v531
      %v533 = vpop.f32.mrb[0].mxu0
      %534 = vmatprep.mubr.f32.mxu0 0.0
      %535 = vmatmul.mubr.f32.gmra.mrb[0].mxu0 %v405
      %v536 = vpop.f32.mrb[0].mxu0
      %v537 = vadd.f32 %v308, %v536
      %v538 = vpop.f32.mrb[0].mxu0
      %539 = vmatprep.mubr.f32.mxu0 0.0
      %540 = vmatmul.mubr.f32.gmra.mrb[0].mxu0 %v408
      %v541 = vpop.f32.mrb[0].mxu0
      %v542 = vadd.f32 %v313, %v541
      %v543 = vpop.f32.mrb[0].mxu0
      %544 = vmatprep.mubr.f32.mxu0 0.0
      %545 = vmatmul.mubr.f32.gmra.mrb[0].mxu0 %v411
      %v546 = vpop.f32.mrb[0].mxu0
      %v547 = vadd.f32 %v318, %v546
      %v548 = vpop.f32.mrb[0].mxu0
      %549 = vmatprep.mubr.f32.mxu0 0.0
      %550 = vmatmul.mubr.f32.gmra.mrb[0].mxu0 %v414
      %v551 = vpop.f32.mrb[0].mxu0
      %v552 = vadd.f32 %v323, %v551
      %v553 = vpop.f32.mrb[0].mxu0
      %554 = vmatprep.mubr.f32.mxu0 0.0
      %555 = vmatmul.mubr.f32.gmra.mrb[0].mxu0 %v417
      %v556 = vpop.f32.mrb[0].mxu0
      %v557 = vadd.f32 %v328, %v556
      %v558 = vpop.f32.mrb[0].mxu0
      %559 = vmatprep.mubr.f32.mxu0 0.0
      %560 = vmatmul.mubr.f32.gmra.mrb[0].mxu0 %v420
      %v561 = vpop.f32.mrb[0].mxu0
      %v562 = vadd.f32 %v333, %v561
      %v563 = vpop.f32.mrb[0].mxu0
      %564 = vmatprep.mubr.f32.mxu0 0.0
      %565 = vmatmul.mubr.f32.gmra.mrb[0].mxu0 %v423
      %v566 = vpop.f32.mrb[0].mxu0
      %v567 = vadd.f32 %v338, %v566
      %v568 = vpop.f32.mrb[0].mxu0
      %569 = vmatprep.mubr.f32.mxu0 0.0
      %570 = vmatmul.mubr.f32.gmra.mrb[0].mxu0 %v426
      %v571 = vpop.f32.mrb[0].mxu0
      %v572 = vadd.f32 %v343, %v571
      %v573 = vpop.f32.mrb[0].mxu0
      %574 = vmatprep.mubr.f32.mxu0 0.0
      %575 = vmatmul.mubr.f32.gmra.mrb[0].mxu0 %v429
      %v576 = vpop.f32.mrb[0].mxu0
      %v577 = vadd.f32 %v348, %v576
      %v578 = vpop.f32.mrb[0].mxu0
      %579 = vmatprep.mubr.f32.mxu0 0.0
      %580 = vmatmul.mubr.f32.gmra.mrb[0].mxu0 %v432
      %v581 = vpop.f32.mrb[0].mxu0
      %v582 = vadd.f32 %v353, %v581
      %v583 = vpop.f32.mrb[0].mxu0
      %584 = vmatprep.mubr.f32.mxu0 0.0
      %585 = vmatmul.mubr.f32.gmra.mrb[0].mxu0 %v435
      %v586 = vpop.f32.mrb[0].mxu0
      %v587 = vadd.f32 %v358, %v586
      %v588 = vpop.f32.mrb[0].mxu0
      %589 = vmatprep.mubr.f32.mxu0 0.0
      %590 = vmatmul.mubr.f32.gmra.mrb[0].mxu0 %v438
      %v591 = vpop.f32.mrb[0].mxu0
      %v592 = vadd.f32 %v363, %v591
      %v593 = vpop.f32.mrb[0].mxu0
      %594 = vmatprep.mubr.f32.mxu0 0.0
      %595 = vmatmul.mubr.f32.gmra.mrb[0].mxu0 %v441
      %v596 = vpop.f32.mrb[0].mxu0
      %v597 = vadd.f32 %v368, %v596
      %v598 = vpop.f32.mrb[0].mxu0
      %599 = vmatprep.mubr.f32.mxu0 0.0
      %600 = vmatmul.mubr.f32.gmra.mrb[0].mxu0 %v444
      %v601 = vpop.f32.mrb[0].mxu0
      %v602 = vadd.f32 %v373, %v601
      %v603 = vpop.f32.mrb[0].mxu0
      %604 = vmatprep.mubr.f32.mxu0 0.0
      %605 = vmatmul.mubr.f32.gmra.mrb[0].mxu0 %v447
      %v606 = vpop.f32.mrb[0].mxu0
      %v607 = vadd.f32 %v378, %v606
      %v608 = vpop.f32.mrb[0].mxu0
      %609 = vmatprep.mubr.f32.mxu0 0.0
      %610 = vmatmul.mubr.f32.gmra.mrb[0].mxu0 %v450
      %v611 = vpop.f32.mrb[0].mxu0
      %v612 = vadd.f32 %v383, %v611
      %v613 = vpop.f32.mrb[0].mxu0
      %614 = vmatprep.mubr.f32.mxu0 0.0
      %615 = vmatmul.mubr.f32.gmra.mrb[0].mxu0 %v453
      %v616 = vpop.f32.mrb[0].mxu0
      %v617 = vadd.f32 %v388, %v616
      %v618 = vpop.f32.mrb[0].mxu0
      %619 = vmatprep.mubr.f32.mxu0 0.0
      %620 = vmatmul.mubr.f32.gmra.mrb[0].mxu0 %v456
      %v621 = vpop.f32.mrb[0].mxu0
      %v622 = vadd.f32 %v393, %v621
      %v623 = vpop.f32.mrb[0].mxu0
      %624 = vmatprep.mubr.f32.mxu0 0.0
      %625 = vmatmul.mubr.f32.gmra.mrb[0].mxu0 %v459
      %v626 = vpop.f32.mrb[0].mxu0
      %v627 = vadd.f32 %v398, %v626
      %v628 = vpop.f32.mrb[0].mxu0
      %629 = vdwg.mxu0
      %v630 = vtanh.pop %v532
      %v631 = vtanh.pop %v537
      %v632 = vtanh.pop %v542
      %v633 = vtanh.pop %v547
      %v634 = vtanh.pop %v552
      %v635 = vtanh.pop %v557
      %v636 = vtanh.pop %v562
      %v637 = vtanh.pop %v567
      %v638 = vtanh.pop %v572
      %v639 = vtanh.pop %v577
      %v640 = vtanh.pop %v582
      %v641 = vtanh.pop %v587
      %v642 = vtanh.pop %v592
      %v643 = vtanh.pop %v597
      %v644 = vtanh.pop %v602
      %v645 = vtanh.pop %v607
      %v646 = vtanh.pop %v612
      %v647 = vtanh.pop %v617
      %v648 = vtanh.pop %v622
      %v649 = vtanh.pop %v627
      %v650 = vmax.f32 %v630, 0.0
      %v651 = vmax.f32 %v631, 0.0
      %v652 = vmax.f32 %v632, 0.0
      %v653 = vmax.f32 %v633, 0.0
      %v654 = vmax.f32 %v634, 0.0
      %v655 = vmax.f32 %v635, 0.0
      %v656 = vmax.f32 %v636, 0.0
      %v657 = vmax.f32 %v637, 0.0
      %v658 = vmax.f32 %v638, 0.0
      %v659 = vmax.f32 %v639, 0.0
      %v660 = vmax.f32 %v640, 0.0
      %v661 = vmax.f32 %v641, 0.0
      %v662 = vmax.f32 %v642, 0.0
      %v663 = vmax.f32 %v643, 0.0
      %v664 = vmax.f32 %v644, 0.0
      %v665 = vmax.f32 %v645, 0.0
      %v666 = vmax.f32 %v646, 0.0
      %v667 = vmax.f32 %v647, 0.0
      %v668 = vmax.f32 %v648, 0.0
      %v669 = vmax.f32 %v649, 0.0
      %v670 = vmul.f32 %v650, 0.5
      %v671 = vmul.f32 %v651, 0.5
      %v672 = vmul.f32 %v652, 0.5
      %v673 = vmul.f32 %v653, 0.5
      %v674 = vmul.f32 %v654, 0.5
      %v675 = vmul.f32 %v655, 0.5
      %v676 = vmul.f32 %v656, 0.5
      %v677 = vmul.f32 %v657, 0.5
      %v678 = vmul.f32 %v658, 0.5
      %v679 = vmul.f32 %v659, 0.5
      %v680 = vmul.f32 %v660, 0.5
      %v681 = vmul.f32 %v661, 0.5
      %v682 = vmul.f32 %v662, 0.5
      %v683 = vmul.f32 %v663, 0.5
      %v684 = vmul.f32 %v664, 0.5
      %v685 = vmul.f32 %v665, 0.5
      %v686 = vmul.f32 %v666, 0.5
      %v687 = vmul.f32 %v667, 0.5
      %v688 = vmul.f32 %v668, 0.5
      %v689 = vmul.f32 %v669, 0.5
      %v690 = vsub.f32 1.5, %v670
      %v691 = vsub.f32 1.5, %v671
      %v692 = vsub.f32 1.5, %v672
      %v693 = vsub.f32 1.5, %v673
      %v694 = vsub.f32 1.5, %v674
      %v695 = vsub.f32 1.5, %v675
      %v696 = vsub.f32 1.5, %v676
      %v697 = vsub.f32 1.5, %v677
      %v698 = vsub.f32 1.5, %v678
      %v699 = vsub.f32 1.5, %v679
      %v700 = vsub.f32 1.5, %v680
      %v701 = vsub.f32 1.5, %v681
      %v702 = vsub.f32 1.5, %v682
      %v703 = vsub.f32 1.5, %v683
      %v704 = vsub.f32 1.5, %v684
      %v705 = vsub.f32 1.5, %v685
      %v706 = vsub.f32 1.5, %v686
      %v707 = vsub.f32 1.5, %v687
      %v708 = vsub.f32 1.5, %v688
      %v709 = vsub.f32 1.5, %v689
      %v710 = vld [vmem:[%s3] sm:$0xff]
      %v711 = vld [vmem:[%s3 + $0x8] sm:$0xff]
      %v712 = vld [vmem:[%s3 + $0x10] sm:$0xff]
      %v713 = vld [vmem:[%s3 + $0x18] sm:$0xff]
      %v714 = vld [vmem:[%s3 + $0x20] sm:$0xff]
      %v715 = vld [vmem:[%s3 + $0x28] sm:$0xff]
      %v716 = vld [vmem:[%s3 + $0x30] sm:$0xff]
      %v717 = vld [vmem:[%s3 + $0x38] sm:$0xff]
      %v718 = vld [vmem:[%s3 + $0x40] sm:$0xff]
      %v719 = vld [vmem:[%s3 + $0x48] sm:$0xff]
      %v720 = vld [vmem:[%s3 + $0x50] sm:$0xff]
      %v721 = vld [vmem:[%s3 + $0x58] sm:$0xff]
      %v722 = vld [vmem:[%s3 + $0x60] sm:$0xff]
      %v723 = vld [vmem:[%s3 + $0x68] sm:$0xff]
      %v724 = vld [vmem:[%s3 + $0x70] sm:$0xff]
      %v725 = vld [vmem:[%s3 + $0x78] sm:$0xff]
      %v726 = vld [vmem:[%s3 + $0x80] sm:$0xff]
      %v727 = vld [vmem:[%s3 + $0x88] sm:$0xff]
      %v728 = vld [vmem:[%s3 + $0x90] sm:$0xff]
      %v729 = vld [vmem:[%s3 + $0x98] sm:$0xff]
      %v730 = vmul.f32 %v690, %v710
      %v731 = vmul.f32 %v691, %v711
      %v732 = vmul.f32 %v692, %v712
      %v733 = vmul.f32 %v693, %v713
      %v734 = vmul.f32 %v694, %v714
      %v735 = vmul.f32 %v695, %v715
      %v736 = vmul.f32 %v696, %v716
      %v737 = vmul.f32 %v697, %v717
      %v738 = vmul.f32 %v698, %v718
      %v739 = vmul.f32 %v699, %v719
      %v740 = vmul.f32 %v700, %v720
      %v741 = vmul.f32 %v701, %v721
      %v742 = vmul.f32 %v702, %v722
      %v743 = vmul.f32 %v703, %v723
      %v744 = vmul.f32 %v704, %v724
      %v745 = vmul.f32 %v705, %v725
      %v746 = vmul.f32 %v706, %v726
      %v747 = vmul.f32 %v707, %v727
      %v748 = vmul.f32 %v708, %v728
      %v749 = vmul.f32 %v709, %v729
      %vm750 = vcmask 97280
      %751 = vst.msk [vmem:[#allocation2] sm:$0xff] %vm750, %v730
      %752 = vst.msk [vmem:[#allocation2 + $0x8] sm:$0xff] %vm750, %v731
      %753 = vst.msk [vmem:[#allocation2 + $0x10] sm:$0xff] %vm750, %v732
      %754 = vst.msk [vmem:[#allocation2 + $0x18] sm:$0xff] %vm750, %v733
      %755 = vst.msk [vmem:[#allocation2 + $0x20] sm:$0xff] %vm750, %v734
      %756 = vst.msk [vmem:[#allocation2 + $0x28] sm:$0xff] %vm750, %v735
      %757 = vst.msk [vmem:[#allocation2 + $0x30] sm:$0xff] %vm750, %v736
      %758 = vst.msk [vmem:[#allocation2 + $0x38] sm:$0xff] %vm750, %v737
      %759 = vst.msk [vmem:[#allocation2 + $0x40] sm:$0xff] %vm750, %v738
      %760 = vst.msk [vmem:[#allocation2 + $0x48] sm:$0xff] %vm750, %v739
      %761 = vst.msk [vmem:[#allocation2 + $0x50] sm:$0xff] %vm750, %v740
      %762 = vst.msk [vmem:[#allocation2 + $0x58] sm:$0xff] %vm750, %v741
      %763 = vst.msk [vmem:[#allocation2 + $0x60] sm:$0xff] %vm750, %v742
      %764 = vst.msk [vmem:[#allocation2 + $0x68] sm:$0xff] %vm750, %v743
      %765 = vst.msk [vmem:[#allocation2 + $0x70] sm:$0xff] %vm750, %v744
      %766 = vst.msk [vmem:[#allocation2 + $0x78] sm:$0xff] %vm750, %v745
      %767 = vst.msk [vmem:[#allocation2 + $0x80] sm:$0xff] %vm750, %v746
      %768 = vst.msk [vmem:[#allocation2 + $0x88] sm:$0xff] %vm750, %v747
      %769 = vst.msk [vmem:[#allocation2 + $0x90] sm:$0xff] %vm750, %v748
      %770 = vst.msk [vmem:[#allocation2 + $0x98] sm:$0xff] %vm750, %v749
      %791 = vrot.lane.b32.xlu0 %v730, 127
      %v792 = vpop.permute.xlu0 %791
      %793 = vrot.lane.b32.xlu0 %v731, 127
      %v794 = vpop.permute.xlu0 %793
      %795 = vrot.lane.b32.xlu0 %v732, 127
      %v796 = vpop.permute.xlu0 %795
      %797 = vrot.lane.b32.xlu0 %v733, 127
      %v798 = vpop.permute.xlu0 %797
      %799 = vrot.lane.b32.xlu0 %v734, 127
      %v800 = vpop.permute.xlu0 %799
      %801 = vrot.lane.b32.xlu0 %v735, 127
      %v802 = vpop.permute.xlu0 %801
      %803 = vrot.lane.b32.xlu0 %v736, 127
      %v804 = vpop.permute.xlu0 %803
      %805 = vrot.lane.b32.xlu0 %v737, 127
      %v806 = vpop.permute.xlu0 %805
      %807 = vrot.lane.b32.xlu0 %v738, 127
      %v808 = vpop.permute.xlu0 %807
      %809 = vrot.lane.b32.xlu0 %v739, 127
      %v810 = vpop.permute.xlu0 %809
      %811 = vrot.lane.b32.xlu0 %v740, 127
      %v812 = vpop.permute.xlu0 %811
      %813 = vrot.lane.b32.xlu0 %v741, 127
      %v814 = vpop.permute.xlu0 %813
      %815 = vrot.lane.b32.xlu0 %v742, 127
      %v816 = vpop.permute.xlu0 %815
      %817 = vrot.lane.b32.xlu0 %v743, 127
      %v818 = vpop.permute.xlu0 %817
      %819 = vrot.lane.b32.xlu0 %v744, 127
      %v820 = vpop.permute.xlu0 %819
      %821 = vrot.lane.b32.xlu0 %v745, 127
      %v822 = vpop.permute.xlu0 %821
      %823 = vrot.lane.b32.xlu0 %v746, 127
      %v824 = vpop.permute.xlu0 %823
      %825 = vrot.lane.b32.xlu0 %v747, 127
      %v826 = vpop.permute.xlu0 %825
      %827 = vrot.lane.b32.xlu0 %v748, 127
      %v828 = vpop.permute.xlu0 %827
      %829 = vrot.lane.b32.xlu0 %v749, 127
      %v830 = vpop.permute.xlu0 %829
      %851 = vst.msk [vmem:[#allocation2 + $0xa0] sm:$0xff] %vm750, %v792
      %852 = vst.msk [vmem:[#allocation2 + $0xa8] sm:$0xff] %vm750, %v794
      %853 = vst.msk [vmem:[#allocation2 + $0xb0] sm:$0xff] %vm750, %v796
      %854 = vst.msk [vmem:[#allocation2 + $0xb8] sm:$0xff] %vm750, %v798
      %855 = vst.msk [vmem:[#allocation2 + $0xc0] sm:$0xff] %vm750, %v800
      %856 = vst.msk [vmem:[#allocation2 + $0xc8] sm:$0xff] %vm750, %v802
      %857 = vst.msk [vmem:[#allocation2 + $0xd0] sm:$0xff] %vm750, %v804
      %858 = vst.msk [vmem:[#allocation2 + $0xd8] sm:$0xff] %vm750, %v806
      %859 = vst.msk [vmem:[#allocation2 + $0xe0] sm:$0xff] %vm750, %v808
      %860 = vst.msk [vmem:[#allocation2 + $0xe8] sm:$0xff] %vm750, %v810
      %861 = vst.msk [vmem:[#allocation2 + $0xf0] sm:$0xff] %vm750, %v812
      %862 = vst.msk [vmem:[#allocation2 + $0xf8] sm:$0xff] %vm750, %v814
      %863 = vst.msk [vmem:[#allocation2 + $0x100] sm:$0xff] %vm750, %v816
      %864 = vst.msk [vmem:[#allocation2 + $0x108] sm:$0xff] %vm750, %v818
      %865 = vst.msk [vmem:[#allocation2 + $0x110] sm:$0xff] %vm750, %v820
      %866 = vst.msk [vmem:[#allocation2 + $0x118] sm:$0xff] %vm750, %v822
      %867 = vst.msk [vmem:[#allocation2 + $0x120] sm:$0xff] %vm750, %v824
      %868 = vst.msk [vmem:[#allocation2 + $0x128] sm:$0xff] %vm750, %v826
      %869 = vst.msk [vmem:[#allocation2 + $0x130] sm:$0xff] %vm750, %v828
      %870 = vst.msk [vmem:[#allocation2 + $0x138] sm:$0xff] %vm750, %v830
      %871 = vrot.lane.b32.xlu0 %v730, 126
      %v872 = vpop.permute.xlu0 %871
      %873 = vrot.lane.b32.xlu0 %v731, 126
      %v874 = vpop.permute.xlu0 %873
      %875 = vrot.lane.b32.xlu0 %v732, 126
      %v876 = vpop.permute.xlu0 %875
      %877 = vrot.lane.b32.xlu0 %v733, 126
      %v878 = vpop.permute.xlu0 %877
      %879 = vrot.lane.b32.xlu0 %v734, 126
      %v880 = vpop.permute.xlu0 %879
      %881 = vrot.lane.b32.xlu0 %v735, 126
      %v882 = vpop.permute.xlu0 %881
      %883 = vrot.lane.b32.xlu0 %v736, 126
      %v884 = vpop.permute.xlu0 %883
      %885 = vrot.lane.b32.xlu0 %v737, 126
      %v886 = vpop.permute.xlu0 %885
      %887 = vrot.lane.b32.xlu0 %v738, 126
      %v888 = vpop.permute.xlu0 %887
      %889 = vrot.lane.b32.xlu0 %v739, 126
      %v890 = vpop.permute.xlu0 %889
      %891 = vrot.lane.b32.xlu0 %v740, 126
      %v892 = vpop.permute.xlu0 %891
      %893 = vrot.lane.b32.xlu0 %v741, 126
      %v894 = vpop.permute.xlu0 %893
      %895 = vrot.lane.b32.xlu0 %v742, 126
      %v896 = vpop.permute.xlu0 %895
      %897 = vrot.lane.b32.xlu0 %v743, 126
      %v898 = vpop.permute.xlu0 %897
      %899 = vrot.lane.b32.xlu0 %v744, 126
      %v900 = vpop.permute.xlu0 %899
      %901 = vrot.lane.b32.xlu0 %v745, 126
      %v902 = vpop.permute.xlu0 %901
      %903 = vrot.lane.b32.xlu0 %v746, 126
      %v904 = vpop.permute.xlu0 %903
      %905 = vrot.lane.b32.xlu0 %v747, 126
      %v906 = vpop.permute.xlu0 %905
      %907 = vrot.lane.b32.xlu0 %v748, 126
      %v908 = vpop.permute.xlu0 %907
      %909 = vrot.lane.b32.xlu0 %v749, 126
      %v910 = vpop.permute.xlu0 %909
      %931 = vst.msk [vmem:[#allocation2 + $0x140] sm:$0xff] %vm750, %v872
      %932 = vst.msk [vmem:[#allocation2 + $0x148] sm:$0xff] %vm750, %v874
      %933 = vst.msk [vmem:[#allocation2 + $0x150] sm:$0xff] %vm750, %v876
      %934 = vst.msk [vmem:[#allocation2 + $0x158] sm:$0xff] %vm750, %v878
      %935 = vst.msk [vmem:[#allocation2 + $0x160] sm:$0xff] %vm750, %v880
      %936 = vst.msk [vmem:[#allocation2 + $0x168] sm:$0xff] %vm750, %v882
      %937 = vst.msk [vmem:[#allocation2 + $0x170] sm:$0xff] %vm750, %v884
      %938 = vst.msk [vmem:[#allocation2 + $0x178] sm:$0xff] %vm750, %v886
      %939 = vst.msk [vmem:[#allocation2 + $0x180] sm:$0xff] %vm750, %v888
      %940 = vst.msk [vmem:[#allocation2 + $0x188] sm:$0xff] %vm750, %v890
      %941 = vst.msk [vmem:[#allocation2 + $0x190] sm:$0xff] %vm750, %v892
      %942 = vst.msk [vmem:[#allocation2 + $0x198] sm:$0xff] %vm750, %v894
      %943 = vst.msk [vmem:[#allocation2 + $0x1a0] sm:$0xff] %vm750, %v896
      %944 = vst.msk [vmem:[#allocation2 + $0x1a8] sm:$0xff] %vm750, %v898
      %945 = vst.msk [vmem:[#allocation2 + $0x1b0] sm:$0xff] %vm750, %v900
      %946 = vst.msk [vmem:[#allocation2 + $0x1b8] sm:$0xff] %vm750, %v902
      %947 = vst.msk [vmem:[#allocation2 + $0x1c0] sm:$0xff] %vm750, %v904
      %948 = vst.msk [vmem:[#allocation2 + $0x1c8] sm:$0xff] %vm750, %v906
      %949 = vst.msk [vmem:[#allocation2 + $0x1d0] sm:$0xff] %vm750, %v908
      %950 = vst.msk [vmem:[#allocation2 + $0x1d8] sm:$0xff] %vm750, %v910
      %951 = vrot.lane.b32.xlu0 %v730, 125
      %v952 = vpop.permute.xlu0 %951
      %953 = vrot.lane.b32.xlu0 %v731, 125
      %v954 = vpop.permute.xlu0 %953
      %955 = vrot.lane.b32.xlu0 %v732, 125
      %v956 = vpop.permute.xlu0 %955
      %957 = vrot.lane.b32.xlu0 %v733, 125
      %v958 = vpop.permute.xlu0 %957
      %959 = vrot.lane.b32.xlu0 %v734, 125
      %v960 = vpop.permute.xlu0 %959
      %961 = vrot.lane.b32.xlu0 %v735, 125
      %v962 = vpop.permute.xlu0 %961
      %963 = vrot.lane.b32.xlu0 %v736, 125
      %v964 = vpop.permute.xlu0 %963
      %965 = vrot.lane.b32.xlu0 %v737, 125
      %v966 = vpop.permute.xlu0 %965
      %967 = vrot.lane.b32.xlu0 %v738, 125
      %v968 = vpop.permute.xlu0 %967
      %969 = vrot.lane.b32.xlu0 %v739, 125
      %v970 = vpop.permute.xlu0 %969
      %971 = vrot.lane.b32.xlu0 %v740, 125
      %v972 = vpop.permute.xlu0 %971
      %973 = vrot.lane.b32.xlu0 %v741, 125
      %v974 = vpop.permute.xlu0 %973
      %975 = vrot.lane.b32.xlu0 %v742, 125
      %v976 = vpop.permute.xlu0 %975
      %977 = vrot.lane.b32.xlu0 %v743, 125
      %v978 = vpop.permute.xlu0 %977
      %979 = vrot.lane.b32.xlu0 %v744, 125
      %v980 = vpop.permute.xlu0 %979
      %981 = vrot.lane.b32.xlu0 %v745, 125
      %v982 = vpop.permute.xlu0 %981
      %983 = vrot.lane.b32.xlu0 %v746, 125
      %v984 = vpop.permute.xlu0 %983
      %985 = vrot.lane.b32.xlu0 %v747, 125
      %v986 = vpop.permute.xlu0 %985
      %987 = vrot.lane.b32.xlu0 %v748, 125
      %v988 = vpop.permute.xlu0 %987
      %989 = vrot.lane.b32.xlu0 %v749, 125
      %v990 = vpop.permute.xlu0 %989
      %1011 = vst.msk [vmem:[#allocation2 + $0x1e0] sm:$0xff] %vm750, %v952
      %1012 = vst.msk [vmem:[#allocation2 + $0x1e8] sm:$0xff] %vm750, %v954
      %1013 = vst.msk [vmem:[#allocation2 + $0x1f0] sm:$0xff] %vm750, %v956
      %1014 = vst.msk [vmem:[#allocation2 + $0x1f8] sm:$0xff] %vm750, %v958
      %1015 = vst.msk [vmem:[#allocation2 + $0x200] sm:$0xff] %vm750, %v960
      %1016 = vst.msk [vmem:[#allocation2 + $0x208] sm:$0xff] %vm750, %v962
      %1017 = vst.msk [vmem:[#allocation2 + $0x210] sm:$0xff] %vm750, %v964
      %1018 = vst.msk [vmem:[#allocation2 + $0x218] sm:$0xff] %vm750, %v966
      %1019 = vst.msk [vmem:[#allocation2 + $0x220] sm:$0xff] %vm750, %v968
      %1020 = vst.msk [vmem:[#allocation2 + $0x228] sm:$0xff] %vm750, %v970
      %1021 = vst.msk [vmem:[#allocation2 + $0x230] sm:$0xff] %vm750, %v972
      %1022 = vst.msk [vmem:[#allocation2 + $0x238] sm:$0xff] %vm750, %v974
      %1023 = vst.msk [vmem:[#allocation2 + $0x240] sm:$0xff] %vm750, %v976
      %1024 = vst.msk [vmem:[#allocation2 + $0x248] sm:$0xff] %vm750, %v978
      %1025 = vst.msk [vmem:[#allocation2 + $0x250] sm:$0xff] %vm750, %v980
      %1026 = vst.msk [vmem:[#allocation2 + $0x258] sm:$0xff] %vm750, %v982
      %1027 = vst.msk [vmem:[#allocation2 + $0x260] sm:$0xff] %vm750, %v984
      %1028 = vst.msk [vmem:[#allocation2 + $0x268] sm:$0xff] %vm750, %v986
      %1029 = vst.msk [vmem:[#allocation2 + $0x270] sm:$0xff] %vm750, %v988
      %1030 = vst.msk [vmem:[#allocation2 + $0x278] sm:$0xff] %vm750, %v990
      %1031 = vrot.lane.b32.xlu0 %v730, 124
      %v1032 = vpop.permute.xlu0 %1031
      %1033 = vrot.lane.b32.xlu0 %v731, 124
      %v1034 = vpop.permute.xlu0 %1033
      %1035 = vrot.lane.b32.xlu0 %v732, 124
      %v1036 = vpop.permute.xlu0 %1035
      %1037 = vrot.lane.b32.xlu0 %v733, 124
      %v1038 = vpop.permute.xlu0 %1037
      %1039 = vrot.lane.b32.xlu0 %v734, 124
      %v1040 = vpop.permute.xlu0 %1039
      %1041 = vrot.lane.b32.xlu0 %v735, 124
      %v1042 = vpop.permute.xlu0 %1041
      %1043 = vrot.lane.b32.xlu0 %v736, 124
      %v1044 = vpop.permute.xlu0 %1043
      %1045 = vrot.lane.b32.xlu0 %v737, 124
      %v1046 = vpop.permute.xlu0 %1045
      %1047 = vrot.lane.b32.xlu0 %v738, 124
      %v1048 = vpop.permute.xlu0 %1047
      %1049 = vrot.lane.b32.xlu0 %v739, 124
      %v1050 = vpop.permute.xlu0 %1049
      %1051 = vrot.lane.b32.xlu0 %v740, 124
      %v1052 = vpop.permute.xlu0 %1051
      %1053 = vrot.lane.b32.xlu0 %v741, 124
      %v1054 = vpop.permute.xlu0 %1053
      %1055 = vrot.lane.b32.xlu0 %v742, 124
      %v1056 = vpop.permute.xlu0 %1055
      %1057 = vrot.lane.b32.xlu0 %v743, 124
      %v1058 = vpop.permute.xlu0 %1057
      %1059 = vrot.lane.b32.xlu0 %v744, 124
      %v1060 = vpop.permute.xlu0 %1059
      %1061 = vrot.lane.b32.xlu0 %v745, 124
      %v1062 = vpop.permute.xlu0 %1061
      %1063 = vrot.lane.b32.xlu0 %v746, 124
      %v1064 = vpop.permute.xlu0 %1063
      %1065 = vrot.lane.b32.xlu0 %v747, 124
      %v1066 = vpop.permute.xlu0 %1065
      %1067 = vrot.lane.b32.xlu0 %v748, 124
      %v1068 = vpop.permute.xlu0 %1067
      %1069 = vrot.lane.b32.xlu0 %v749, 124
      %v1070 = vpop.permute.xlu0 %1069
      %1091 = vst.msk [vmem:[#allocation2 + $0x280] sm:$0xff] %vm750, %v1032
      %1092 = vst.msk [vmem:[#allocation2 + $0x288] sm:$0xff] %vm750, %v1034
      %1093 = vst.msk [vmem:[#allocation2 + $0x290] sm:$0xff] %vm750, %v1036
      %1094 = vst.msk [vmem:[#allocation2 + $0x298] sm:$0xff] %vm750, %v1038
      %1095 = vst.msk [vmem:[#allocation2 + $0x2a0] sm:$0xff] %vm750, %v1040
      %1096 = vst.msk [vmem:[#allocation2 + $0x2a8] sm:$0xff] %vm750, %v1042
      %1097 = vst.msk [vmem:[#allocation2 + $0x2b0] sm:$0xff] %vm750, %v1044
      %1098 = vst.msk [vmem:[#allocation2 + $0x2b8] sm:$0xff] %vm750, %v1046
      %1099 = vst.msk [vmem:[#allocation2 + $0x2c0] sm:$0xff] %vm750, %v1048
      %1100 = vst.msk [vmem:[#allocation2 + $0x2c8] sm:$0xff] %vm750, %v1050
      %1101 = vst.msk [vmem:[#allocation2 + $0x2d0] sm:$0xff] %vm750, %v1052
      %1102 = vst.msk [vmem:[#allocation2 + $0x2d8] sm:$0xff] %vm750, %v1054
      %1103 = vst.msk [vmem:[#allocation2 + $0x2e0] sm:$0xff] %vm750, %v1056
      %1104 = vst.msk [vmem:[#allocation2 + $0x2e8] sm:$0xff] %vm750, %v1058
      %1105 = vst.msk [vmem:[#allocation2 + $0x2f0] sm:$0xff] %vm750, %v1060
      %1106 = vst.msk [vmem:[#allocation2 + $0x2f8] sm:$0xff] %vm750, %v1062
      %1107 = vst.msk [vmem:[#allocation2 + $0x300] sm:$0xff] %vm750, %v1064
      %1108 = vst.msk [vmem:[#allocation2 + $0x308] sm:$0xff] %vm750, %v1066
      %1109 = vst.msk [vmem:[#allocation2 + $0x310] sm:$0xff] %vm750, %v1068
      %1110 = vst.msk [vmem:[#allocation2 + $0x318] sm:$0xff] %vm750, %v1070
      %1111 = vrot.lane.b32.xlu0 %v730, 123
      %v1112 = vpop.permute.xlu0 %1111
      %1113 = vrot.lane.b32.xlu0 %v731, 123
      %v1114 = vpop.permute.xlu0 %1113
      %1115 = vrot.lane.b32.xlu0 %v732, 123
      %v1116 = vpop.permute.xlu0 %1115
      %1117 = vrot.lane.b32.xlu0 %v733, 123
      %v1118 = vpop.permute.xlu0 %1117
      %1119 = vrot.lane.b32.xlu0 %v734, 123
      %v1120 = vpop.permute.xlu0 %1119
      %1121 = vrot.lane.b32.xlu0 %v735, 123
      %v1122 = vpop.permute.xlu0 %1121
      %1123 = vrot.lane.b32.xlu0 %v736, 123
      %v1124 = vpop.permute.xlu0 %1123
      %1125 = vrot.lane.b32.xlu0 %v737, 123
      %v1126 = vpop.permute.xlu0 %1125
      %1127 = vrot.lane.b32.xlu0 %v738, 123
      %v1128 = vpop.permute.xlu0 %1127
      %1129 = vrot.lane.b32.xlu0 %v739, 123
      %v1130 = vpop.permute.xlu0 %1129
      %1131 = vrot.lane.b32.xlu0 %v740, 123
      %v1132 = vpop.permute.xlu0 %1131
      %1133 = vrot.lane.b32.xlu0 %v741, 123
      %v1134 = vpop.permute.xlu0 %1133
      %1135 = vrot.lane.b32.xlu0 %v742, 123
      %v1136 = vpop.permute.xlu0 %1135
      %1137 = vrot.lane.b32.xlu0 %v743, 123
      %v1138 = vpop.permute.xlu0 %1137
      %1139 = vrot.lane.b32.xlu0 %v744, 123
      %v1140 = vpop.permute.xlu0 %1139
      %1141 = vrot.lane.b32.xlu0 %v745, 123
      %v1142 = vpop.permute.xlu0 %1141
      %1143 = vrot.lane.b32.xlu0 %v746, 123
      %v1144 = vpop.permute.xlu0 %1143
      %1145 = vrot.lane.b32.xlu0 %v747, 123
      %v1146 = vpop.permute.xlu0 %1145
      %1147 = vrot.lane.b32.xlu0 %v748, 123
      %v1148 = vpop.permute.xlu0 %1147
      %1149 = vrot.lane.b32.xlu0 %v749, 123
      %v1150 = vpop.permute.xlu0 %1149
      %1171 = vst.msk [vmem:[#allocation2 + $0x320] sm:$0xff] %vm750, %v1112
      %1172 = vst.msk [vmem:[#allocation2 + $0x328] sm:$0xff] %vm750, %v1114
      %1173 = vst.msk [vmem:[#allocation2 + $0x330] sm:$0xff] %vm750, %v1116
      %1174 = vst.msk [vmem:[#allocation2 + $0x338] sm:$0xff] %vm750, %v1118
      %1175 = vst.msk [vmem:[#allocation2 + $0x340] sm:$0xff] %vm750, %v1120
      %1176 = vst.msk [vmem:[#allocation2 + $0x348] sm:$0xff] %vm750, %v1122
      %1177 = vst.msk [vmem:[#allocation2 + $0x350] sm:$0xff] %vm750, %v1124
      %1178 = vst.msk [vmem:[#allocation2 + $0x358] sm:$0xff] %vm750, %v1126
      %1179 = vst.msk [vmem:[#allocation2 + $0x360] sm:$0xff] %vm750, %v1128
      %1180 = vst.msk [vmem:[#allocation2 + $0x368] sm:$0xff] %vm750, %v1130
      %1181 = vst.msk [vmem:[#allocation2 + $0x370] sm:$0xff] %vm750, %v1132
      %1182 = vst.msk [vmem:[#allocation2 + $0x378] sm:$0xff] %vm750, %v1134
      %1183 = vst.msk [vmem:[#allocation2 + $0x380] sm:$0xff] %vm750, %v1136
      %1184 = vst.msk [vmem:[#allocation2 + $0x388] sm:$0xff] %vm750, %v1138
      %1185 = vst.msk [vmem:[#allocation2 + $0x390] sm:$0xff] %vm750, %v1140
      %1186 = vst.msk [vmem:[#allocation2 + $0x398] sm:$0xff] %vm750, %v1142
      %1187 = vst.msk [vmem:[#allocation2 + $0x3a0] sm:$0xff] %vm750, %v1144
      %1188 = vst.msk [vmem:[#allocation2 + $0x3a8] sm:$0xff] %vm750, %v1146
      %1189 = vst.msk [vmem:[#allocation2 + $0x3b0] sm:$0xff] %vm750, %v1148
      %1190 = vst.msk [vmem:[#allocation2 + $0x3b8] sm:$0xff] %vm750, %v1150
      %1191 = vrot.lane.b32.xlu0 %v730, 122
      %v1192 = vpop.permute.xlu0 %1191
      %1193 = vrot.lane.b32.xlu0 %v731, 122
      %v1194 = vpop.permute.xlu0 %1193
      %1195 = vrot.lane.b32.xlu0 %v732, 122
      %v1196 = vpop.permute.xlu0 %1195
      %1197 = vrot.lane.b32.xlu0 %v733, 122
      %v1198 = vpop.permute.xlu0 %1197
      %1199 = vrot.lane.b32.xlu0 %v734, 122
      %v1200 = vpop.permute.xlu0 %1199
      %1201 = vrot.lane.b32.xlu0 %v735, 122
      %v1202 = vpop.permute.xlu0 %1201
      %1203 = vrot.lane.b32.xlu0 %v736, 122
      %v1204 = vpop.permute.xlu0 %1203
      %1205 = vrot.lane.b32.xlu0 %v737, 122
      %v1206 = vpop.permute.xlu0 %1205
      %1207 = vrot.lane.b32.xlu0 %v738, 122
      %v1208 = vpop.permute.xlu0 %1207
      %1209 = vrot.lane.b32.xlu0 %v739, 122
      %v1210 = vpop.permute.xlu0 %1209
      %1211 = vrot.lane.b32.xlu0 %v740, 122
      %v1212 = vpop.permute.xlu0 %1211
      %1213 = vrot.lane.b32.xlu0 %v741, 122
      %v1214 = vpop.permute.xlu0 %1213
      %1215 = vrot.lane.b32.xlu0 %v742, 122
      %v1216 = vpop.permute.xlu0 %1215
      %1217 = vrot.lane.b32.xlu0 %v743, 122
      %v1218 = vpop.permute.xlu0 %1217
      %1219 = vrot.lane.b32.xlu0 %v744, 122
      %v1220 = vpop.permute.xlu0 %1219
      %1221 = vrot.lane.b32.xlu0 %v745, 122
      %v1222 = vpop.permute.xlu0 %1221
      %1223 = vrot.lane.b32.xlu0 %v746, 122
      %v1224 = vpop.permute.xlu0 %1223
      %1225 = vrot.lane.b32.xlu0 %v747, 122
      %v1226 = vpop.permute.xlu0 %1225
      %1227 = vrot.lane.b32.xlu0 %v748, 122
      %v1228 = vpop.permute.xlu0 %1227
      %1229 = vrot.lane.b32.xlu0 %v749, 122
      %v1230 = vpop.permute.xlu0 %1229
      %1251 = vst.msk [vmem:[#allocation2 + $0x3c0] sm:$0xff] %vm750, %v1192
      %1252 = vst.msk [vmem:[#allocation2 + $0x3c8] sm:$0xff] %vm750, %v1194
      %1253 = vst.msk [vmem:[#allocation2 + $0x3d0] sm:$0xff] %vm750, %v1196
      %1254 = vst.msk [vmem:[#allocation2 + $0x3d8] sm:$0xff] %vm750, %v1198
      %1255 = vst.msk [vmem:[#allocation2 + $0x3e0] sm:$0xff] %vm750, %v1200
      %1256 = vst.msk [vmem:[#allocation2 + $0x3e8] sm:$0xff] %vm750, %v1202
      %1257 = vst.msk [vmem:[#allocation2 + $0x3f0] sm:$0xff] %vm750, %v1204
      %1258 = vst.msk [vmem:[#allocation2 + $0x3f8] sm:$0xff] %vm750, %v1206
      %1259 = vst.msk [vmem:[#allocation2 + $0x400] sm:$0xff] %vm750, %v1208
      %1260 = vst.msk [vmem:[#allocation2 + $0x408] sm:$0xff] %vm750, %v1210
      %1261 = vst.msk [vmem:[#allocation2 + $0x410] sm:$0xff] %vm750, %v1212
      %1262 = vst.msk [vmem:[#allocation2 + $0x418] sm:$0xff] %vm750, %v1214
      %1263 = vst.msk [vmem:[#allocation2 + $0x420] sm:$0xff] %vm750, %v1216
      %1264 = vst.msk [vmem:[#allocation2 + $0x428] sm:$0xff] %vm750, %v1218
      %1265 = vst.msk [vmem:[#allocation2 + $0x430] sm:$0xff] %vm750, %v1220
      %1266 = vst.msk [vmem:[#allocation2 + $0x438] sm:$0xff] %vm750, %v1222
      %1267 = vst.msk [vmem:[#allocation2 + $0x440] sm:$0xff] %vm750, %v1224
      %1268 = vst.msk [vmem:[#allocation2 + $0x448] sm:$0xff] %vm750, %v1226
      %1269 = vst.msk [vmem:[#allocation2 + $0x450] sm:$0xff] %vm750, %v1228
      %1270 = vst.msk [vmem:[#allocation2 + $0x458] sm:$0xff] %vm750, %v1230
      %1271 = vrot.lane.b32.xlu0 %v730, 121
      %v1272 = vpop.permute.xlu0 %1271
      %1273 = vrot.lane.b32.xlu0 %v731, 121
      %v1274 = vpop.permute.xlu0 %1273
      %1275 = vrot.lane.b32.xlu0 %v732, 121
      %v1276 = vpop.permute.xlu0 %1275
      %1277 = vrot.lane.b32.xlu0 %v733, 121
      %v1278 = vpop.permute.xlu0 %1277
      %1279 = vrot.lane.b32.xlu0 %v734, 121
      %v1280 = vpop.permute.xlu0 %1279
      %1281 = vrot.lane.b32.xlu0 %v735, 121
      %v1282 = vpop.permute.xlu0 %1281
      %1283 = vrot.lane.b32.xlu0 %v736, 121
      %v1284 = vpop.permute.xlu0 %1283
      %1285 = vrot.lane.b32.xlu0 %v737, 121
      %v1286 = vpop.permute.xlu0 %1285
      %1287 = vrot.lane.b32.xlu0 %v738, 121
      %v1288 = vpop.permute.xlu0 %1287
      %1289 = vrot.lane.b32.xlu0 %v739, 121
      %v1290 = vpop.permute.xlu0 %1289
      %1291 = vrot.lane.b32.xlu0 %v740, 121
      %v1292 = vpop.permute.xlu0 %1291
      %1293 = vrot.lane.b32.xlu0 %v741, 121
      %v1294 = vpop.permute.xlu0 %1293
      %1295 = vrot.lane.b32.xlu0 %v742, 121
      %v1296 = vpop.permute.xlu0 %1295
      %1297 = vrot.lane.b32.xlu0 %v743, 121
      %v1298 = vpop.permute.xlu0 %1297
      %1299 = vrot.lane.b32.xlu0 %v744, 121
      %v1300 = vpop.permute.xlu0 %1299
      %1301 = vrot.lane.b32.xlu0 %v745, 121
      %v1302 = vpop.permute.xlu0 %1301
      %1303 = vrot.lane.b32.xlu0 %v746, 121
      %v1304 = vpop.permute.xlu0 %1303
      %1305 = vrot.lane.b32.xlu0 %v747, 121
      %v1306 = vpop.permute.xlu0 %1305
      %1307 = vrot.lane.b32.xlu0 %v748, 121
      %v1308 = vpop.permute.xlu0 %1307
      %1309 = vrot.lane.b32.xlu0 %v749, 121
      %v1310 = vpop.permute.xlu0 %1309
      %1331 = vst.msk [vmem:[#allocation2 + $0x460] sm:$0xff] %vm750, %v1272
      %1332 = vst.msk [vmem:[#allocation2 + $0x468] sm:$0xff] %vm750, %v1274
      %1333 = vst.msk [vmem:[#allocation2 + $0x470] sm:$0xff] %vm750, %v1276
      %1334 = vst.msk [vmem:[#allocation2 + $0x478] sm:$0xff] %vm750, %v1278
      %1335 = vst.msk [vmem:[#allocation2 + $0x480] sm:$0xff] %vm750, %v1280
      %1336 = vst.msk [vmem:[#allocation2 + $0x488] sm:$0xff] %vm750, %v1282
      %1337 = vst.msk [vmem:[#allocation2 + $0x490] sm:$0xff] %vm750, %v1284
      %1338 = vst.msk [vmem:[#allocation2 + $0x498] sm:$0xff] %vm750, %v1286
      %1339 = vst.msk [vmem:[#allocation2 + $0x4a0] sm:$0xff] %vm750, %v1288
      %1340 = vst.msk [vmem:[#allocation2 + $0x4a8] sm:$0xff] %vm750, %v1290
      %1341 = vst.msk [vmem:[#allocation2 + $0x4b0] sm:$0xff] %vm750, %v1292
      %1342 = vst.msk [vmem:[#allocation2 + $0x4b8] sm:$0xff] %vm750, %v1294
      %1343 = vst.msk [vmem:[#allocation2 + $0x4c0] sm:$0xff] %vm750, %v1296
      %1344 = vst.msk [vmem:[#allocation2 + $0x4c8] sm:$0xff] %vm750, %v1298
      %1345 = vst.msk [vmem:[#allocation2 + $0x4d0] sm:$0xff] %vm750, %v1300
      %1346 = vst.msk [vmem:[#allocation2 + $0x4d8] sm:$0xff] %vm750, %v1302
      %1347 = vst.msk [vmem:[#allocation2 + $0x4e0] sm:$0xff] %vm750, %v1304
      %1348 = vst.msk [vmem:[#allocation2 + $0x4e8] sm:$0xff] %vm750, %v1306
      %1349 = vst.msk [vmem:[#allocation2 + $0x4f0] sm:$0xff] %vm750, %v1308
      %1350 = vst.msk [vmem:[#allocation2 + $0x4f8] sm:$0xff] %vm750, %v1310
      %1351 = vrot.lane.b32.xlu0 %v730, 120
      %v1352 = vpop.permute.xlu0 %1351
      %1353 = vrot.lane.b32.xlu0 %v731, 120
      %v1354 = vpop.permute.xlu0 %1353
      %1355 = vrot.lane.b32.xlu0 %v732, 120
      %v1356 = vpop.permute.xlu0 %1355
      %1357 = vrot.lane.b32.xlu0 %v733, 120
      %v1358 = vpop.permute.xlu0 %1357
      %1359 = vrot.lane.b32.xlu0 %v734, 120
      %v1360 = vpop.permute.xlu0 %1359
      %1361 = vrot.lane.b32.xlu0 %v735, 120
      %v1362 = vpop.permute.xlu0 %1361
      %1363 = vrot.lane.b32.xlu0 %v736, 120
      %v1364 = vpop.permute.xlu0 %1363
      %1365 = vrot.lane.b32.xlu0 %v737, 120
      %v1366 = vpop.permute.xlu0 %1365
      %1367 = vrot.lane.b32.xlu0 %v738, 120
      %v1368 = vpop.permute.xlu0 %1367
      %1369 = vrot.lane.b32.xlu0 %v739, 120
      %v1370 = vpop.permute.xlu0 %1369
      %1371 = vrot.lane.b32.xlu0 %v740, 120
      %v1372 = vpop.permute.xlu0 %1371
      %1373 = vrot.lane.b32.xlu0 %v741, 120
      %v1374 = vpop.permute.xlu0 %1373
      %1375 = vrot.lane.b32.xlu0 %v742, 120
      %v1376 = vpop.permute.xlu0 %1375
      %1377 = vrot.lane.b32.xlu0 %v743, 120
      %v1378 = vpop.permute.xlu0 %1377
      %1379 = vrot.lane.b32.xlu0 %v744, 120
      %v1380 = vpop.permute.xlu0 %1379
      %1381 = vrot.lane.b32.xlu0 %v745, 120
      %v1382 = vpop.permute.xlu0 %1381
      %1383 = vrot.lane.b32.xlu0 %v746, 120
      %v1384 = vpop.permute.xlu0 %1383
      %1385 = vrot.lane.b32.xlu0 %v747, 120
      %v1386 = vpop.permute.xlu0 %1385
      %1387 = vrot.lane.b32.xlu0 %v748, 120
      %v1388 = vpop.permute.xlu0 %1387
      %1389 = vrot.lane.b32.xlu0 %v749, 120
      %v1390 = vpop.permute.xlu0 %1389
      %1411 = vst.msk [vmem:[#allocation2 + $0x500] sm:$0xff] %vm750, %v1352
      %1412 = vst.msk [vmem:[#allocation2 + $0x508] sm:$0xff] %vm750, %v1354
      %1413 = vst.msk [vmem:[#allocation2 + $0x510] sm:$0xff] %vm750, %v1356
      %1414 = vst.msk [vmem:[#allocation2 + $0x518] sm:$0xff] %vm750, %v1358
      %1415 = vst.msk [vmem:[#allocation2 + $0x520] sm:$0xff] %vm750, %v1360
      %1416 = vst.msk [vmem:[#allocation2 + $0x528] sm:$0xff] %vm750, %v1362
      %1417 = vst.msk [vmem:[#allocation2 + $0x530] sm:$0xff] %vm750, %v1364
      %1418 = vst.msk [vmem:[#allocation2 + $0x538] sm:$0xff] %vm750, %v1366
      %1419 = vst.msk [vmem:[#allocation2 + $0x540] sm:$0xff] %vm750, %v1368
      %1420 = vst.msk [vmem:[#allocation2 + $0x548] sm:$0xff] %vm750, %v1370
      %1421 = vst.msk [vmem:[#allocation2 + $0x550] sm:$0xff] %vm750, %v1372
      %1422 = vst.msk [vmem:[#allocation2 + $0x558] sm:$0xff] %vm750, %v1374
      %1423 = vst.msk [vmem:[#allocation2 + $0x560] sm:$0xff] %vm750, %v1376
      %1424 = vst.msk [vmem:[#allocation2 + $0x568] sm:$0xff] %vm750, %v1378
      %1425 = vst.msk [vmem:[#allocation2 + $0x570] sm:$0xff] %vm750, %v1380
      %1426 = vst.msk [vmem:[#allocation2 + $0x578] sm:$0xff] %vm750, %v1382
      %1427 = vst.msk [vmem:[#allocation2 + $0x580] sm:$0xff] %vm750, %v1384
      %1428 = vst.msk [vmem:[#allocation2 + $0x588] sm:$0xff] %vm750, %v1386
      %1429 = vst.msk [vmem:[#allocation2 + $0x590] sm:$0xff] %vm750, %v1388
      %1430 = vst.msk [vmem:[#allocation2 + $0x598] sm:$0xff] %vm750, %v1390
      %v1431 = vld [vmem:[%s4] sm:$0xff]
      %v1432 = vld [vmem:[%s4 + $0x8] sm:$0xff]
      %v1433 = vld [vmem:[%s4 + $0x10] sm:$0xff]
      %v1434 = vld [vmem:[%s4 + $0x18] sm:$0xff]
      %v1435 = vld [vmem:[%s4 + $0x20] sm:$0xff]
      %v1436 = vld [vmem:[%s4 + $0x28] sm:$0xff]
      %v1437 = vld [vmem:[%s4 + $0x30] sm:$0xff]
      %v1438 = vld [vmem:[%s4 + $0x38] sm:$0xff]
      %v1439 = vld [vmem:[%s4 + $0x40] sm:$0xff]
      %v1440 = vld [vmem:[%s4 + $0x48] sm:$0xff]
      %v1441 = vld [vmem:[%s4 + $0x50] sm:$0xff]
      %v1442 = vld [vmem:[%s4 + $0x58] sm:$0xff]
      %v1443 = vld [vmem:[%s4 + $0x60] sm:$0xff]
      %v1444 = vld [vmem:[%s4 + $0x68] sm:$0xff]
      %v1445 = vld [vmem:[%s4 + $0x70] sm:$0xff]
      %v1446 = vld [vmem:[%s4 + $0x78] sm:$0xff]
      %v1447 = vld [vmem:[%s4 + $0x80] sm:$0xff]
      %v1448 = vld [vmem:[%s4 + $0x88] sm:$0xff]
      %v1449 = vld [vmem:[%s4 + $0x90] sm:$0xff]
      %v1450 = vld [vmem:[%s4 + $0x98] sm:$0xff]
      %v1451 = vld [vmem:[%s4 + $0xa0] sm:$0xff]
      %v1452 = vld [vmem:[%s4 + $0xa8] sm:$0xff]
      %v1453 = vld [vmem:[%s4 + $0xb0] sm:$0xff]
      %v1454 = vld [vmem:[%s4 + $0xb8] sm:$0xff]
      %v1455 = vld [vmem:[%s4 + $0xc0] sm:$0xff]
      %v1456 = vld [vmem:[%s4 + $0xc8] sm:$0xff]
      %v1457 = vld [vmem:[%s4 + $0xd0] sm:$0xff]
      %v1458 = vld [vmem:[%s4 + $0xd8] sm:$0xff]
      %v1459 = vld [vmem:[%s4 + $0xe0] sm:$0xff]
      %v1460 = vld [vmem:[%s4 + $0xe8] sm:$0xff]
      %v1461 = vld [vmem:[%s4 + $0xf0] sm:$0xff]
      %v1462 = vld [vmem:[%s4 + $0xf8] sm:$0xff]
      %v1463 = vld [vmem:[%s4 + $0x100] sm:$0xff]
      %v1464 = vld [vmem:[%s4 + $0x108] sm:$0xff]
      %v1465 = vld [vmem:[%s4 + $0x110] sm:$0xff]
      %v1466 = vld [vmem:[%s4 + $0x118] sm:$0xff]
      %v1467 = vld [vmem:[%s4 + $0x120] sm:$0xff]
      %v1468 = vld [vmem:[%s4 + $0x128] sm:$0xff]
      %v1469 = vld [vmem:[%s4 + $0x130] sm:$0xff]
      %v1470 = vld [vmem:[%s4 + $0x138] sm:$0xff]
      %v1471 = vld [vmem:[%s4 + $0x140] sm:$0xff]
      %v1472 = vld [vmem:[%s4 + $0x148] sm:$0xff]
      %v1473 = vld [vmem:[%s4 + $0x150] sm:$0xff]
      %v1474 = vld [vmem:[%s4 + $0x158] sm:$0xff]
      %v1475 = vld [vmem:[%s4 + $0x160] sm:$0xff]
      %v1476 = vld [vmem:[%s4 + $0x168] sm:$0xff]
      %v1477 = vld [vmem:[%s4 + $0x170] sm:$0xff]
      %v1478 = vld [vmem:[%s4 + $0x178] sm:$0xff]
      %v1479 = vld [vmem:[%s4 + $0x180] sm:$0xff]
      %v1480 = vld [vmem:[%s4 + $0x188] sm:$0xff]
      %v1481 = vld [vmem:[%s4 + $0x190] sm:$0xff]
      %v1482 = vld [vmem:[%s4 + $0x198] sm:$0xff]
      %v1483 = vld [vmem:[%s4 + $0x1a0] sm:$0xff]
      %v1484 = vld [vmem:[%s4 + $0x1a8] sm:$0xff]
      %v1485 = vld [vmem:[%s4 + $0x1b0] sm:$0xff]
      %v1486 = vld [vmem:[%s4 + $0x1b8] sm:$0xff]
      %v1487 = vld [vmem:[%s4 + $0x1c0] sm:$0xff]
      %v1488 = vld [vmem:[%s4 + $0x1c8] sm:$0xff]
      %v1489 = vld [vmem:[%s4 + $0x1d0] sm:$0xff]
      %v1490 = vld [vmem:[%s4 + $0x1d8] sm:$0xff]
      %v1491 = vld [vmem:[%s4 + $0x1e0] sm:$0xff]
      %v1492 = vld [vmem:[%s4 + $0x1e8] sm:$0xff]
      %v1493 = vld [vmem:[%s4 + $0x1f0] sm:$0xff]
      %v1494 = vld [vmem:[%s4 + $0x1f8] sm:$0xff]
      %v1495 = vld [vmem:[%s4 + $0x200] sm:$0xff]
      %v1496 = vld [vmem:[%s4 + $0x208] sm:$0xff]
      %v1497 = vld [vmem:[%s4 + $0x210] sm:$0xff]
      %v1498 = vld [vmem:[%s4 + $0x218] sm:$0xff]
      %v1499 = vld [vmem:[%s4 + $0x220] sm:$0xff]
      %v1500 = vld [vmem:[%s4 + $0x228] sm:$0xff]
      %v1501 = vld [vmem:[%s4 + $0x230] sm:$0xff]
      %v1502 = vld [vmem:[%s4 + $0x238] sm:$0xff]
      %v1503 = vld [vmem:[%s4 + $0x240] sm:$0xff]
      %v1504 = vld [vmem:[%s4 + $0x248] sm:$0xff]
      %v1505 = vld [vmem:[%s4 + $0x250] sm:$0xff]
      %v1506 = vld [vmem:[%s4 + $0x258] sm:$0xff]
      %v1507 = vld [vmem:[%s4 + $0x260] sm:$0xff]
      %v1508 = vld [vmem:[%s4 + $0x268] sm:$0xff]
      %v1509 = vld [vmem:[%s4 + $0x270] sm:$0xff]
      %v1510 = vld [vmem:[%s4 + $0x278] sm:$0xff]
      %v1511 = vld [vmem:[%s4 + $0x280] sm:$0xff]
      %v1512 = vld [vmem:[%s4 + $0x288] sm:$0xff]
      %v1513 = vld [vmem:[%s4 + $0x290] sm:$0xff]
      %v1514 = vld [vmem:[%s4 + $0x298] sm:$0xff]
      %v1515 = vld [vmem:[%s4 + $0x2a0] sm:$0xff]
      %v1516 = vld [vmem:[%s4 + $0x2a8] sm:$0xff]
      %v1517 = vld [vmem:[%s4 + $0x2b0] sm:$0xff]
      %v1518 = vld [vmem:[%s4 + $0x2b8] sm:$0xff]
      %v1519 = vld [vmem:[%s4 + $0x2c0] sm:$0xff]
      %v1520 = vld [vmem:[%s4 + $0x2c8] sm:$0xff]
      %v1521 = vld [vmem:[%s4 + $0x2d0] sm:$0xff]
      %v1522 = vld [vmem:[%s4 + $0x2d8] sm:$0xff]
      %v1523 = vld [vmem:[%s4 + $0x2e0] sm:$0xff]
      %v1524 = vld [vmem:[%s4 + $0x2e8] sm:$0xff]
      %v1525 = vld [vmem:[%s4 + $0x2f0] sm:$0xff]
      %v1526 = vld [vmem:[%s4 + $0x2f8] sm:$0xff]
      %v1527 = vld [vmem:[%s4 + $0x300] sm:$0xff]
      %v1528 = vld [vmem:[%s4 + $0x308] sm:$0xff]
      %v1529 = vld [vmem:[%s4 + $0x310] sm:$0xff]
      %v1530 = vld [vmem:[%s4 + $0x318] sm:$0xff]
      %v1531 = vld [vmem:[%s4 + $0x320] sm:$0xff]
      %v1532 = vld [vmem:[%s4 + $0x328] sm:$0xff]
      %v1533 = vld [vmem:[%s4 + $0x330] sm:$0xff]
      %v1534 = vld [vmem:[%s4 + $0x338] sm:$0xff]
      %v1535 = vld [vmem:[%s4 + $0x340] sm:$0xff]
      %v1536 = vld [vmem:[%s4 + $0x348] sm:$0xff]
      %v1537 = vld [vmem:[%s4 + $0x350] sm:$0xff]
      %v1538 = vld [vmem:[%s4 + $0x358] sm:$0xff]
      %v1539 = vld [vmem:[%s4 + $0x360] sm:$0xff]
      %v1540 = vld [vmem:[%s4 + $0x368] sm:$0xff]
      %v1541 = vld [vmem:[%s4 + $0x370] sm:$0xff]
      %v1542 = vld [vmem:[%s4 + $0x378] sm:$0xff]
      %v1543 = vld [vmem:[%s4 + $0x380] sm:$0xff]
      %v1544 = vld [vmem:[%s4 + $0x388] sm:$0xff]
      %v1545 = vld [vmem:[%s4 + $0x390] sm:$0xff]
      %v1546 = vld [vmem:[%s4 + $0x398] sm:$0xff]
      %v1547 = vld [vmem:[%s4 + $0x3a0] sm:$0xff]
      %v1548 = vld [vmem:[%s4 + $0x3a8] sm:$0xff]
      %v1549 = vld [vmem:[%s4 + $0x3b0] sm:$0xff]
      %v1550 = vld [vmem:[%s4 + $0x3b8] sm:$0xff]
      %v1551 = vld [vmem:[%s4 + $0x3c0] sm:$0xff]
      %v1552 = vld [vmem:[%s4 + $0x3c8] sm:$0xff]
      %v1553 = vld [vmem:[%s4 + $0x3d0] sm:$0xff]
      %v1554 = vld [vmem:[%s4 + $0x3d8] sm:$0xff]
      %v1555 = vld [vmem:[%s4 + $0x3e0] sm:$0xff]
      %v1556 = vld [vmem:[%s4 + $0x3e8] sm:$0xff]
      %v1557 = vld [vmem:[%s4 + $0x3f0] sm:$0xff]
      %v1558 = vld [vmem:[%s4 + $0x3f8] sm:$0xff]
      %v1559 = vld [vmem:[%s4 + $0x400] sm:$0xff]
      %v1560 = vld [vmem:[%s4 + $0x408] sm:$0xff]
      %v1561 = vld [vmem:[%s4 + $0x410] sm:$0xff]
      %v1562 = vld [vmem:[%s4 + $0x418] sm:$0xff]
      %v1563 = vld [vmem:[%s4 + $0x420] sm:$0xff]
      %v1564 = vld [vmem:[%s4 + $0x428] sm:$0xff]
      %v1565 = vld [vmem:[%s4 + $0x430] sm:$0xff]
      %v1566 = vld [vmem:[%s4 + $0x438] sm:$0xff]
      %v1567 = vld [vmem:[%s4 + $0x440] sm:$0xff]
      %v1568 = vld [vmem:[%s4 + $0x448] sm:$0xff]
      %v1569 = vld [vmem:[%s4 + $0x450] sm:$0xff]
      %v1570 = vld [vmem:[%s4 + $0x458] sm:$0xff]
      %v1571 = vld [vmem:[%s4 + $0x460] sm:$0xff]
      %v1572 = vld [vmem:[%s4 + $0x468] sm:$0xff]
      %v1573 = vld [vmem:[%s4 + $0x470] sm:$0xff]
      %v1574 = vld [vmem:[%s4 + $0x478] sm:$0xff]
      %v1575 = vld [vmem:[#allocation2] sm:$0xff]
      %v1576 = vld [vmem:[#allocation2 + $0x8] sm:$0xff]
      %v1577 = vld [vmem:[#allocation2 + $0x10] sm:$0xff]
      %v1578 = vld [vmem:[#allocation2 + $0x18] sm:$0xff]
      %v1579 = vld [vmem:[#allocation2 + $0x20] sm:$0xff]
      %v1580 = vld [vmem:[#allocation2 + $0x28] sm:$0xff]
      %v1581 = vld [vmem:[#allocation2 + $0x30] sm:$0xff]
      %v1582 = vld [vmem:[#allocation2 + $0x38] sm:$0xff]
      %v1583 = vld [vmem:[#allocation2 + $0x40] sm:$0xff]
      %v1584 = vld [vmem:[#allocation2 + $0x48] sm:$0xff]
      %v1585 = vld [vmem:[#allocation2 + $0x50] sm:$0xff]
      %v1586 = vld [vmem:[#allocation2 + $0x58] sm:$0xff]
      %v1587 = vld [vmem:[#allocation2 + $0x60] sm:$0xff]
      %v1588 = vld [vmem:[#allocation2 + $0x68] sm:$0xff]
      %v1589 = vld [vmem:[#allocation2 + $0x70] sm:$0xff]
      %v1590 = vld [vmem:[#allocation2 + $0x78] sm:$0xff]
      %v1591 = vld [vmem:[#allocation2 + $0x80] sm:$0xff]
      %v1592 = vld [vmem:[#allocation2 + $0x88] sm:$0xff]
      %v1593 = vld [vmem:[#allocation2 + $0x90] sm:$0xff]
      %v1594 = vld [vmem:[#allocation2 + $0x98] sm:$0xff]
      %v1595 = vld [vmem:[#allocation2 + $0xa0] sm:$0xff]
      %v1596 = vld [vmem:[#allocation2 + $0xa8] sm:$0xff]
      %v1597 = vld [vmem:[#allocation2 + $0xb0] sm:$0xff]
      %v1598 = vld [vmem:[#allocation2 + $0xb8] sm:$0xff]
      %v1599 = vld [vmem:[#allocation2 + $0xc0] sm:$0xff]
      %v1600 = vld [vmem:[#allocation2 + $0xc8] sm:$0xff]
      %v1601 = vld [vmem:[#allocation2 + $0xd0] sm:$0xff]
      %v1602 = vld [vmem:[#allocation2 + $0xd8] sm:$0xff]
      %v1603 = vld [vmem:[#allocation2 + $0xe0] sm:$0xff]
      %v1604 = vld [vmem:[#allocation2 + $0xe8] sm:$0xff]
      %v1605 = vld [vmem:[#allocation2 + $0xf0] sm:$0xff]
      %v1606 = vld [vmem:[#allocation2 + $0xf8] sm:$0xff]
      %v1607 = vld [vmem:[#allocation2 + $0x100] sm:$0xff]
      %v1608 = vld [vmem:[#allocation2 + $0x108] sm:$0xff]
      %v1609 = vld [vmem:[#allocation2 + $0x110] sm:$0xff]
      %v1610 = vld [vmem:[#allocation2 + $0x118] sm:$0xff]
      %v1611 = vld [vmem:[#allocation2 + $0x120] sm:$0xff]
      %v1612 = vld [vmem:[#allocation2 + $0x128] sm:$0xff]
      %v1613 = vld [vmem:[#allocation2 + $0x130] sm:$0xff]
      %v1614 = vld [vmem:[#allocation2 + $0x138] sm:$0xff]
      %v1615 = vld [vmem:[#allocation2 + $0x140] sm:$0xff]
      %v1616 = vld [vmem:[#allocation2 + $0x148] sm:$0xff]
      %v1617 = vld [vmem:[#allocation2 + $0x150] sm:$0xff]
      %v1618 = vld [vmem:[#allocation2 + $0x158] sm:$0xff]
      %v1619 = vld [vmem:[#allocation2 + $0x160] sm:$0xff]
      %v1620 = vld [vmem:[#allocation2 + $0x168] sm:$0xff]
      %v1621 = vld [vmem:[#allocation2 + $0x170] sm:$0xff]
      %v1622 = vld [vmem:[#allocation2 + $0x178] sm:$0xff]
      %v1623 = vld [vmem:[#allocation2 + $0x180] sm:$0xff]
      %v1624 = vld [vmem:[#allocation2 + $0x188] sm:$0xff]
      %v1625 = vld [vmem:[#allocation2 + $0x190] sm:$0xff]
      %v1626 = vld [vmem:[#allocation2 + $0x198] sm:$0xff]
      %v1627 = vld [vmem:[#allocation2 + $0x1a0] sm:$0xff]
      %v1628 = vld [vmem:[#allocation2 + $0x1a8] sm:$0xff]
      %v1629 = vld [vmem:[#allocation2 + $0x1b0] sm:$0xff]
      %v1630 = vld [vmem:[#allocation2 + $0x1b8] sm:$0xff]
      %v1631 = vld [vmem:[#allocation2 + $0x1c0] sm:$0xff]
      %v1632 = vld [vmem:[#allocation2 + $0x1c8] sm:$0xff]
      %v1633 = vld [vmem:[#allocation2 + $0x1d0] sm:$0xff]
      %v1634 = vld [vmem:[#allocation2 + $0x1d8] sm:$0xff]
      %v1635 = vld [vmem:[#allocation2 + $0x1e0] sm:$0xff]
      %v1636 = vld [vmem:[#allocation2 + $0x1e8] sm:$0xff]
      %v1637 = vld [vmem:[#allocation2 + $0x1f0] sm:$0xff]
      %v1638 = vld [vmem:[#allocation2 + $0x1f8] sm:$0xff]
      %v1639 = vld [vmem:[#allocation2 + $0x200] sm:$0xff]
      %v1640 = vld [vmem:[#allocation2 + $0x208] sm:$0xff]
      %v1641 = vld [vmem:[#allocation2 + $0x210] sm:$0xff]
      %v1642 = vld [vmem:[#allocation2 + $0x218] sm:$0xff]
      %v1643 = vld [vmem:[#allocation2 + $0x220] sm:$0xff]
      %v1644 = vld [vmem:[#allocation2 + $0x228] sm:$0xff]
      %v1645 = vld [vmem:[#allocation2 + $0x230] sm:$0xff]
      %v1646 = vld [vmem:[#allocation2 + $0x238] sm:$0xff]
      %v1647 = vld [vmem:[#allocation2 + $0x240] sm:$0xff]
      %v1648 = vld [vmem:[#allocation2 + $0x248] sm:$0xff]
      %v1649 = vld [vmem:[#allocation2 + $0x250] sm:$0xff]
      %v1650 = vld [vmem:[#allocation2 + $0x258] sm:$0xff]
      %v1651 = vld [vmem:[#allocation2 + $0x260] sm:$0xff]
      %v1652 = vld [vmem:[#allocation2 + $0x268] sm:$0xff]
      %v1653 = vld [vmem:[#allocation2 + $0x270] sm:$0xff]
      %v1654 = vld [vmem:[#allocation2 + $0x278] sm:$0xff]
      %v1655 = vld [vmem:[#allocation2 + $0x280] sm:$0xff]
      %v1656 = vld [vmem:[#allocation2 + $0x288] sm:$0xff]
      %v1657 = vld [vmem:[#allocation2 + $0x290] sm:$0xff]
      %v1658 = vld [vmem:[#allocation2 + $0x298] sm:$0xff]
      %v1659 = vld [vmem:[#allocation2 + $0x2a0] sm:$0xff]
      %v1660 = vld [vmem:[#allocation2 + $0x2a8] sm:$0xff]
      %v1661 = vld [vmem:[#allocation2 + $0x2b0] sm:$0xff]
      %v1662 = vld [vmem:[#allocation2 + $0x2b8] sm:$0xff]
      %v1663 = vld [vmem:[#allocation2 + $0x2c0] sm:$0xff]
      %v1664 = vld [vmem:[#allocation2 + $0x2c8] sm:$0xff]
      %v1665 = vld [vmem:[#allocation2 + $0x2d0] sm:$0xff]
      %v1666 = vld [vmem:[#allocation2 + $0x2d8] sm:$0xff]
      %v1667 = vld [vmem:[#allocation2 + $0x2e0] sm:$0xff]
      %v1668 = vld [vmem:[#allocation2 + $0x2e8] sm:$0xff]
      %v1669 = vld [vmem:[#allocation2 + $0x2f0] sm:$0xff]
      %v1670 = vld [vmem:[#allocation2 + $0x2f8] sm:$0xff]
      %v1671 = vld [vmem:[#allocation2 + $0x300] sm:$0xff]
      %v1672 = vld [vmem:[#allocation2 + $0x308] sm:$0xff]
      %v1673 = vld [vmem:[#allocation2 + $0x310] sm:$0xff]
      %v1674 = vld [vmem:[#allocation2 + $0x318] sm:$0xff]
      %v1675 = vld [vmem:[#allocation2 + $0x320] sm:$0xff]
      %v1676 = vld [vmem:[#allocation2 + $0x328] sm:$0xff]
      %v1677 = vld [vmem:[#allocation2 + $0x330] sm:$0xff]
      %v1678 = vld [vmem:[#allocation2 + $0x338] sm:$0xff]
      %v1679 = vld [vmem:[#allocation2 + $0x340] sm:$0xff]
      %v1680 = vld [vmem:[#allocation2 + $0x348] sm:$0xff]
      %v1681 = vld [vmem:[#allocation2 + $0x350] sm:$0xff]
      %v1682 = vld [vmem:[#allocation2 + $0x358] sm:$0xff]
      %v1683 = vld [vmem:[#allocation2 + $0x360] sm:$0xff]
      %v1684 = vld [vmem:[#allocation2 + $0x368] sm:$0xff]
      %v1685 = vld [vmem:[#allocation2 + $0x370] sm:$0xff]
      %v1686 = vld [vmem:[#allocation2 + $0x378] sm:$0xff]
      %v1687 = vld [vmem:[#allocation2 + $0x380] sm:$0xff]
      %v1688 = vld [vmem:[#allocation2 + $0x388] sm:$0xff]
      %v1689 = vld [vmem:[#allocation2 + $0x390] sm:$0xff]
      %v1690 = vld [vmem:[#allocation2 + $0x398] sm:$0xff]
      %v1691 = vld [vmem:[#allocation2 + $0x3a0] sm:$0xff]
      %v1692 = vld [vmem:[#allocation2 + $0x3a8] sm:$0xff]
      %v1693 = vld [vmem:[#allocation2 + $0x3b0] sm:$0xff]
      %v1694 = vld [vmem:[#allocation2 + $0x3b8] sm:$0xff]
      %v1695 = vld [vmem:[#allocation2 + $0x3c0] sm:$0xff]
      %v1696 = vld [vmem:[#allocation2 + $0x3c8] sm:$0xff]
      %v1697 = vld [vmem:[#allocation2 + $0x3d0] sm:$0xff]
      %v1698 = vld [vmem:[#allocation2 + $0x3d8] sm:$0xff]
      %v1699 = vld [vmem:[#allocation2 + $0x3e0] sm:$0xff]
      %v1700 = vld [vmem:[#allocation2 + $0x3e8] sm:$0xff]
      %v1701 = vld [vmem:[#allocation2 + $0x3f0] sm:$0xff]
      %v1702 = vld [vmem:[#allocation2 + $0x3f8] sm:$0xff]
      %v1703 = vld [vmem:[#allocation2 + $0x400] sm:$0xff]
      %v1704 = vld [vmem:[#allocation2 + $0x408] sm:$0xff]
      %v1705 = vld [vmem:[#allocation2 + $0x410] sm:$0xff]
      %v1706 = vld [vmem:[#allocation2 + $0x418] sm:$0xff]
      %v1707 = vld [vmem:[#allocation2 + $0x420] sm:$0xff]
      %v1708 = vld [vmem:[#allocation2 + $0x428] sm:$0xff]
      %v1709 = vld [vmem:[#allocation2 + $0x430] sm:$0xff]
      %v1710 = vld [vmem:[#allocation2 + $0x438] sm:$0xff]
      %v1711 = vld [vmem:[#allocation2 + $0x440] sm:$0xff]
      %v1712 = vld [vmem:[#allocation2 + $0x448] sm:$0xff]
      %v1713 = vld [vmem:[#allocation2 + $0x450] sm:$0xff]
      %v1714 = vld [vmem:[#allocation2 + $0x458] sm:$0xff]
      %v1715 = vld [vmem:[#allocation2 + $0x460] sm:$0xff]
      %v1716 = vld [vmem:[#allocation2 + $0x468] sm:$0xff]
      %v1717 = vld [vmem:[#allocation2 + $0x470] sm:$0xff]
      %v1718 = vld [vmem:[#allocation2 + $0x478] sm:$0xff]
      %v1719 = vld [vmem:[#allocation2 + $0x480] sm:$0xff]
      %v1720 = vld [vmem:[#allocation2 + $0x488] sm:$0xff]
      %v1721 = vld [vmem:[#allocation2 + $0x490] sm:$0xff]
      %v1722 = vld [vmem:[#allocation2 + $0x498] sm:$0xff]
      %v1723 = vld [vmem:[#allocation2 + $0x4a0] sm:$0xff]
      %v1724 = vld [vmem:[#allocation2 + $0x4a8] sm:$0xff]
      %v1725 = vld [vmem:[#allocation2 + $0x4b0] sm:$0xff]
      %v1726 = vld [vmem:[#allocation2 + $0x4b8] sm:$0xff]
      %v1727 = vld [vmem:[#allocation2 + $0x4c0] sm:$0xff]
      %v1728 = vld [vmem:[#allocation2 + $0x4c8] sm:$0xff]
      %v1729 = vld [vmem:[#allocation2 + $0x4d0] sm:$0xff]
      %v1730 = vld [vmem:[#allocation2 + $0x4d8] sm:$0xff]
      %v1731 = vld [vmem:[#allocation2 + $0x4e0] sm:$0xff]
      %v1732 = vld [vmem:[#allocation2 + $0x4e8] sm:$0xff]
      %v1733 = vld [vmem:[#allocation2 + $0x4f0] sm:$0xff]
      %v1734 = vld [vmem:[#allocation2 + $0x4f8] sm:$0xff]
      %v1735 = vld [vmem:[#allocation2 + $0x500] sm:$0xff]
      %v1736 = vld [vmem:[#allocation2 + $0x508] sm:$0xff]
      %v1737 = vld [vmem:[#allocation2 + $0x510] sm:$0xff]
      %v1738 = vld [vmem:[#allocation2 + $0x518] sm:$0xff]
      %v1739 = vld [vmem:[#allocation2 + $0x520] sm:$0xff]
      %v1740 = vld [vmem:[#allocation2 + $0x528] sm:$0xff]
      %v1741 = vld [vmem:[#allocation2 + $0x530] sm:$0xff]
      %v1742 = vld [vmem:[#allocation2 + $0x538] sm:$0xff]
      %v1743 = vld [vmem:[#allocation2 + $0x540] sm:$0xff]
      %v1744 = vld [vmem:[#allocation2 + $0x548] sm:$0xff]
      %v1745 = vld [vmem:[#allocation2 + $0x550] sm:$0xff]
      %v1746 = vld [vmem:[#allocation2 + $0x558] sm:$0xff]
      %v1747 = vld [vmem:[#allocation2 + $0x560] sm:$0xff]
      %v1748 = vld [vmem:[#allocation2 + $0x568] sm:$0xff]
      %v1749 = vld [vmem:[#allocation2 + $0x570] sm:$0xff]
      %v1750 = vld [vmem:[#allocation2 + $0x578] sm:$0xff]
      %v1751 = vld [vmem:[#allocation2 + $0x580] sm:$0xff]
      %v1752 = vld [vmem:[#allocation2 + $0x588] sm:$0xff]
      %v1753 = vld [vmem:[#allocation2 + $0x590] sm:$0xff]
      %v1754 = vld [vmem:[#allocation2 + $0x598] sm:$0xff]
      %v1755 = vld [vmem:[%s5] sm:$0xff]
      %v1756 = vld [vmem:[%s5 + $0x8] sm:$0xff]
      %v1757 = vld [vmem:[%s5 + $0x10] sm:$0xff]
      %v1758 = vld [vmem:[%s5 + $0x18] sm:$0xff]
      %v1759 = vld [vmem:[%s5 + $0x20] sm:$0xff]
      %v1760 = vld [vmem:[%s5 + $0x28] sm:$0xff]
      %v1761 = vld [vmem:[%s5 + $0x30] sm:$0xff]
      %v1762 = vld [vmem:[%s5 + $0x38] sm:$0xff]
      %v1763 = vld [vmem:[%s5 + $0x40] sm:$0xff]
      %v1764 = vld [vmem:[%s5 + $0x48] sm:$0xff]
      %v1765 = vld [vmem:[%s5 + $0x50] sm:$0xff]
      %v1766 = vld [vmem:[%s5 + $0x58] sm:$0xff]
      %1768 = vset.pattern.permute.xlu0 0
      %1769 = vperm.xlu0 %1768, %v1755
      %v1770 = vpop.permute.xlu0 %1769
      %1773 = vset.pattern.permute.xlu0 0
      %1774 = vperm.xlu0 %1773, %v1756
      %v1775 = vpop.permute.xlu0 %1774
      %1778 = vset.pattern.permute.xlu0 0
      %1779 = vperm.xlu0 %1778, %v1757
      %v1780 = vpop.permute.xlu0 %1779
      %1783 = vset.pattern.permute.xlu0 0
      %1784 = vperm.xlu0 %1783, %v1758
      %v1785 = vpop.permute.xlu0 %1784
      %1788 = vset.pattern.permute.xlu0 0
      %1789 = vperm.xlu0 %1788, %v1759
      %v1790 = vpop.permute.xlu0 %1789
      %1793 = vset.pattern.permute.xlu0 0
      %1794 = vperm.xlu0 %1793, %v1760
      %v1795 = vpop.permute.xlu0 %1794
      %1798 = vset.pattern.permute.xlu0 0
      %1799 = vperm.xlu0 %1798, %v1761
      %v1800 = vpop.permute.xlu0 %1799
      %1803 = vset.pattern.permute.xlu0 0
      %1804 = vperm.xlu0 %1803, %v1762
      %v1805 = vpop.permute.xlu0 %1804
      %1808 = vset.pattern.permute.xlu0 0
      %1809 = vperm.xlu0 %1808, %v1763
      %v1810 = vpop.permute.xlu0 %1809
      %1813 = vset.pattern.permute.xlu0 0
      %1814 = vperm.xlu0 %1813, %v1764
      %v1815 = vpop.permute.xlu0 %1814
      %1818 = vset.pattern.permute.xlu0 0
      %1819 = vperm.xlu0 %1818, %v1765
      %v1820 = vpop.permute.xlu0 %1819
      %1823 = vset.pattern.permute.xlu0 0
      %1824 = vperm.xlu0 %1823, %v1766
      %v1825 = vpop.permute.xlu0 %1824
      %vm1827 = vcmask 261120
      %v1829 = vsel %vm1827, %v1442, 0
      %v1832 = vsel %vm1827, %v1454, 0
      %v1835 = vsel %vm1827, %v1466, 0
      %v1838 = vsel %vm1827, %v1478, 0
      %v1841 = vsel %vm1827, %v1490, 0
      %v1844 = vsel %vm1827, %v1502, 0
      %v1847 = vsel %vm1827, %v1514, 0
      %v1850 = vsel %vm1827, %v1526, 0
      %v1853 = vsel %vm1827, %v1538, 0
      %v1856 = vsel %vm1827, %v1550, 0
      %v1859 = vsel %vm1827, %v1562, 0
      %v1862 = vsel %vm1827, %v1574, 0
      %1864 = vmatprep.subr.mxu0 0.0
      %1865 = vmatpush1.msra.mxu0 %v1575
      %1866 = vmatprep.subr.mxu0 0.0
      %1867 = vmatpush1.msra.mxu0 %v1576
      %1868 = vmatprep.subr.mxu0 0.0
      %1869 = vmatpush1.msra.mxu0 %v1577
      %1870 = vmatprep.subr.mxu0 0.0
      %1871 = vmatpush1.msra.mxu0 %v1578
      %1872 = vmatprep.subr.mxu0 0.0
      %1873 = vmatpush1.msra.mxu0 %v1579
      %1874 = vmatprep.subr.mxu0 0.0
      %1875 = vmatpush1.msra.mxu0 %v1580
      %1876 = vmatprep.subr.mxu0 0.0
      %1877 = vmatpush1.msra.mxu0 %v1581
      %1878 = vmatprep.subr.mxu0 0.0
      %1879 = vmatpush1.msra.mxu0 %v1582
      %1880 = vmatprep.subr.mxu0 0.0
      %1881 = vmatpush1.msra.mxu0 %v1583
      %1882 = vmatprep.subr.mxu0 0.0
      %1883 = vmatpush1.msra.mxu0 %v1584
      %1884 = vmatprep.subr.mxu0 0.0
      %1885 = vmatpush1.msra.mxu0 %v1585
      %1886 = vmatprep.subr.mxu0 0.0
      %1887 = vmatpush1.msra.mxu0 %v1586
      %1888 = vmatprep.subr.mxu0 0.0
      %1889 = vmatpush1.msra.mxu0 %v1587
      %1890 = vmatprep.subr.mxu0 0.0
      %1891 = vmatpush1.msra.mxu0 %v1588
      %1892 = vmatprep.subr.mxu0 0.0
      %1893 = vmatpush1.msra.mxu0 %v1589
      %1894 = vmatprep.subr.mxu0 0.0
      %1895 = vmatpush1.msra.mxu0 %v1590
      %1896 = vmatprep.subr.mxu0 0.0
      %1897 = vmatpush1.msra.mxu0 %v1591
      %1898 = vmatprep.subr.mxu0 0.0
      %1899 = vmatpush1.msra.mxu0 %v1592
      %1900 = vmatprep.subr.mxu0 0.0
      %1901 = vmatpush1.msra.mxu0 %v1593
      %1902 = vmatprep.subr.mxu0 0.0
      %1903 = vmatpush1.msra.mxu0 %v1594
      %1904 = vmatprep.subr.mxu0 0.0
      %1905 = vmatpush1.msra.mxu0 %v1595
      %1906 = vmatprep.subr.mxu0 0.0
      %1907 = vmatpush1.msra.mxu0 %v1596
      %1908 = vmatprep.subr.mxu0 0.0
      %1909 = vmatpush1.msra.mxu0 %v1597
      %1910 = vmatprep.subr.mxu0 0.0
      %1911 = vmatpush1.msra.mxu0 %v1598
      %1912 = vmatprep.subr.mxu0 0.0
      %1913 = vmatpush1.msra.mxu0 %v1599
      %1914 = vmatprep.subr.mxu0 0.0
      %1915 = vmatpush1.msra.mxu0 %v1600
      %1916 = vmatprep.subr.mxu0 0.0
      %1917 = vmatpush1.msra.mxu0 %v1601
      %1918 = vmatprep.subr.mxu0 0.0
      %1919 = vmatpush1.msra.mxu0 %v1602
      %1920 = vmatprep.subr.mxu0 0.0
      %1921 = vmatpush1.msra.mxu0 %v1603
      %1922 = vmatprep.subr.mxu0 0.0
      %1923 = vmatpush1.msra.mxu0 %v1604
      %1924 = vmatprep.subr.mxu0 0.0
      %1925 = vmatpush1.msra.mxu0 %v1605
      %1926 = vmatprep.subr.mxu0 0.0
      %1927 = vmatpush1.msra.mxu0 %v1606
      %1928 = vmatprep.mubr.f32.mxu0 %v1432
      %1929 = vmatmul.mubr.f32.gmra.mrb[0].mxu0 %v1431
      %v1930 = vpop.f32.mrb[0].mxu0
      %v1931 = vadd.f32 %v1770, %v1930
      %v1932 = vpop.f32.mrb[0].mxu0
      %1933 = vmatprep.mubr.f32.mxu0 %v1444
      %1934 = vmatmul.mubr.f32.gmra.mrb[0].mxu0 %v1443
      %v1935 = vpop.f32.mrb[0].mxu0
      %v1936 = vadd.f32 %v1775, %v1935
      %v1937 = vpop.f32.mrb[0].mxu0
      %1938 = vmatprep.mubr.f32.mxu0 %v1456
      %1939 = vmatmul.mubr.f32.gmra.mrb[0].mxu0 %v1455
      %v1940 = vpop.f32.mrb[0].mxu0
      %v1941 = vadd.f32 %v1780, %v1940
      %v1942 = vpop.f32.mrb[0].mxu0
      %1943 = vmatprep.mubr.f32.mxu0 %v1468
      %1944 = vmatmul.mubr.f32.gmra.mrb[0].mxu0 %v1467
      %v1945 = vpop.f32.mrb[0].mxu0
      %v1946 = vadd.f32 %v1785, %v1945
      %v1947 = vpop.f32.mrb[0].mxu0
      %1948 = vmatprep.mubr.f32.mxu0 %v1480
      %1949 = vmatmul.mubr.f32.gmra.mrb[0].mxu0 %v1479
      %v1950 = vpop.f32.mrb[0].mxu0
      %v1951 = vadd.f32 %v1790, %v1950
      %v1952 = vpop.f32.mrb[0].mxu0
      %1953 = vmatprep.mubr.f32.mxu0 %v1492
      %1954 = vmatmul.mubr.f32.gmra.mrb[0].mxu0 %v1491
      %v1955 = vpop.f32.mrb[0].mxu0
      %v1956 = vadd.f32 %v1795, %v1955
      %v1957 = vpop.f32.mrb[0].mxu0
      %1958 = vmatprep.mubr.f32.mxu0 %v1504
      %1959 = vmatmul.mubr.f32.gmra.mrb[0].mxu0 %v1503
      %v1960 = vpop.f32.mrb[0].mxu0
      %v1961 = vadd.f32 %v1800, %v1960
      %v1962 = vpop.f32.mrb[0].mxu0
      %1963 = vmatprep.mubr.f32.mxu0 %v1516
      %1964 = vmatmul.mubr.f32.gmra.mrb[0].mxu0 %v1515
      %v1965 = vpop.f32.mrb[0].mxu0
      %v1966 = vadd.f32 %v1805, %v1965
      %v1967 = vpop.f32.mrb[0].mxu0
      %1968 = vmatprep.mubr.f32.mxu0 %v1528
      %1969 = vmatmul.mubr.f32.gmra.mrb[0].mxu0 %v1527
      %v1970 = vpop.f32.mrb[0].mxu0
      %v1971 = vadd.f32 %v1810, %v1970
      %v1972 = vpop.f32.mrb[0].mxu0
      %1973 = vmatprep.mubr.f32.mxu0 %v1540
      %1974 = vmatmul.mubr.f32.gmra.mrb[0].mxu0 %v1539
      %v1975 = vpop.f32.mrb[0].mxu0
      %v1976 = vadd.f32 %v1815, %v1975
      %v1977 = vpop.f32.mrb[0].mxu0
      %1978 = vmatprep.mubr.f32.mxu0 %v1552
      %1979 = vmatmul.mubr.f32.gmra.mrb[0].mxu0 %v1551
      %v1980 = vpop.f32.mrb[0].mxu0
      %v1981 = vadd.f32 %v1820, %v1980
      %v1982 = vpop.f32.mrb[0].mxu0
      %1983 = vmatprep.mubr.f32.mxu0 %v1564
      %1984 = vmatmul.mubr.f32.gmra.mrb[0].mxu0 %v1563
      %v1985 = vpop.f32.mrb[0].mxu0
      %v1986 = vadd.f32 %v1825, %v1985
      %v1987 = vpop.f32.mrb[0].mxu0
      %1988 = vdwg.mxu0
      %1989 = vmatprep.subr.mxu0 0.0
      %1990 = vmatpush1.msra.mxu0 %v1607
      %1991 = vmatprep.subr.mxu0 0.0
      %1992 = vmatpush1.msra.mxu0 %v1608
      %1993 = vmatprep.subr.mxu0 0.0
      %1994 = vmatpush1.msra.mxu0 %v1609
      %1995 = vmatprep.subr.mxu0 0.0
      %1996 = vmatpush1.msra.mxu0 %v1610
      %1997 = vmatprep.subr.mxu0 0.0
      %1998 = vmatpush1.msra.mxu0 %v1611
      %1999 = vmatprep.subr.mxu0 0.0
      %2000 = vmatpush1.msra.mxu0 %v1612
      %2001 = vmatprep.subr.mxu0 0.0
      %2002 = vmatpush1.msra.mxu0 %v1613
      %2003 = vmatprep.subr.mxu0 0.0
      %2004 = vmatpush1.msra.mxu0 %v1614
      %2005 = vmatprep.subr.mxu0 0.0
      %2006 = vmatpush1.msra.mxu0 %v1615
      %2007 = vmatprep.subr.mxu0 0.0
      %2008 = vmatpush1.msra.mxu0 %v1616
      %2009 = vmatprep.subr.mxu0 0.0
      %2010 = vmatpush1.msra.mxu0 %v1617
      %2011 = vmatprep.subr.mxu0 0.0
      %2012 = vmatpush1.msra.mxu0 %v1618
      %2013 = vmatprep.subr.mxu0 0.0
      %2014 = vmatpush1.msra.mxu0 %v1619
      %2015 = vmatprep.subr.mxu0 0.0
      %2016 = vmatpush1.msra.mxu0 %v1620
      %2017 = vmatprep.subr.mxu0 0.0
      %2018 = vmatpush1.msra.mxu0 %v1621
      %2019 = vmatprep.subr.mxu0 0.0
      %2020 = vmatpush1.msra.mxu0 %v1622
      %2021 = vmatprep.subr.mxu0 0.0
      %2022 = vmatpush1.msra.mxu0 %v1623
      %2023 = vmatprep.subr.mxu0 0.0
      %2024 = vmatpush1.msra.mxu0 %v1624
      %2025 = vmatprep.subr.mxu0 0.0
      %2026 = vmatpush1.msra.mxu0 %v1625
      %2027 = vmatprep.subr.mxu0 0.0
      %2028 = vmatpush1.msra.mxu0 %v1626
      %2029 = vmatprep.subr.mxu0 0.0
      %2030 = vmatpush1.msra.mxu0 %v1627
      %2031 = vmatprep.subr.mxu0 0.0
      %2032 = vmatpush1.msra.mxu0 %v1628
      %2033 = vmatprep.subr.mxu0 0.0
      %2034 = vmatpush1.msra.mxu0 %v1629
      %2035 = vmatprep.subr.mxu0 0.0
      %2036 = vmatpush1.msra.mxu0 %v1630
      %2037 = vmatprep.subr.mxu0 0.0
      %2038 = vmatpush1.msra.mxu0 %v1631
      %2039 = vmatprep.subr.mxu0 0.0
      %2040 = vmatpush1.msra.mxu0 %v1632
      %2041 = vmatprep.subr.mxu0 0.0
      %2042 = vmatpush1.msra.mxu0 %v1633
      %2043 = vmatprep.subr.mxu0 0.0
      %2044 = vmatpush1.msra.mxu0 %v1634
      %2045 = vmatprep.subr.mxu0 0.0
      %2046 = vmatpush1.msra.mxu0 %v1635
      %2047 = vmatprep.subr.mxu0 0.0
      %2048 = vmatpush1.msra.mxu0 %v1636
      %2049 = vmatprep.subr.mxu0 0.0
      %2050 = vmatpush1.msra.mxu0 %v1637
      %2051 = vmatprep.subr.mxu0 0.0
      %2052 = vmatpush1.msra.mxu0 %v1638
      %2053 = vmatprep.mubr.f32.mxu0 %v1434
      %2054 = vmatmul.mubr.f32.gmra.mrb[0].mxu0 %v1433
      %v2055 = vpop.f32.mrb[0].mxu0
      %v2056 = vadd.f32 %v1931, %v2055
      %v2057 = vpop.f32.mrb[0].mxu0
      %2058 = vmatprep.mubr.f32.mxu0 %v1446
      %2059 = vmatmul.mubr.f32.gmra.mrb[0].mxu0 %v1445
      %v2060 = vpop.f32.mrb[0].mxu0
      %v2061 = vadd.f32 %v1936, %v2060
      %v2062 = vpop.f32.mrb[0].mxu0
      %2063 = vmatprep.mubr.f32.mxu0 %v1458
      %2064 = vmatmul.mubr.f32.gmra.mrb[0].mxu0 %v1457
      %v2065 = vpop.f32.mrb[0].mxu0
      %v2066 = vadd.f32 %v1941, %v2065
      %v2067 = vpop.f32.mrb[0].mxu0
      %2068 = vmatprep.mubr.f32.mxu0 %v1470
      %2069 = vmatmul.mubr.f32.gmra.mrb[0].mxu0 %v1469
      %v2070 = vpop.f32.mrb[0].mxu0
      %v2071 = vadd.f32 %v1946, %v2070
      %v2072 = vpop.f32.mrb[0].mxu0
      %2073 = vmatprep.mubr.f32.mxu0 %v1482
      %2074 = vmatmul.mubr.f32.gmra.mrb[0].mxu0 %v1481
      %v2075 = vpop.f32.mrb[0].mxu0
      %v2076 = vadd.f32 %v1951, %v2075
      %v2077 = vpop.f32.mrb[0].mxu0
      %2078 = vmatprep.mubr.f32.mxu0 %v1494
      %2079 = vmatmul.mubr.f32.gmra.mrb[0].mxu0 %v1493
      %v2080 = vpop.f32.mrb[0].mxu0
      %v2081 = vadd.f32 %v1956, %v2080
      %v2082 = vpop.f32.mrb[0].mxu0
      %2083 = vmatprep.mubr.f32.mxu0 %v1506
      %2084 = vmatmul.mubr.f32.gmra.mrb[0].mxu0 %v1505
      %v2085 = vpop.f32.mrb[0].mxu0
      %v2086 = vadd.f32 %v1961, %v2085
      %v2087 = vpop.f32.mrb[0].mxu0
      %2088 = vmatprep.mubr.f32.mxu0 %v1518
      %2089 = vmatmul.mubr.f32.gmra.mrb[0].mxu0 %v1517
      %v2090 = vpop.f32.mrb[0].mxu0
      %v2091 = vadd.f32 %v1966, %v2090
      %v2092 = vpop.f32.mrb[0].mxu0
      %2093 = vmatprep.mubr.f32.mxu0 %v1530
      %2094 = vmatmul.mubr.f32.gmra.mrb[0].mxu0 %v1529
      %v2095 = vpop.f32.mrb[0].mxu0
      %v2096 = vadd.f32 %v1971, %v2095
      %v2097 = vpop.f32.mrb[0].mxu0
      %2098 = vmatprep.mubr.f32.mxu0 %v1542
      %2099 = vmatmul.mubr.f32.gmra.mrb[0].mxu0 %v1541
      %v2100 = vpop.f32.mrb[0].mxu0
      %v2101 = vadd.f32 %v1976, %v2100
      %v2102 = vpop.f32.mrb[0].mxu0
      %2103 = vmatprep.mubr.f32.mxu0 %v1554
      %2104 = vmatmul.mubr.f32.gmra.mrb[0].mxu0 %v1553
      %v2105 = vpop.f32.mrb[0].mxu0
      %v2106 = vadd.f32 %v1981, %v2105
      %v2107 = vpop.f32.mrb[0].mxu0
      %2108 = vmatprep.mubr.f32.mxu0 %v1566
      %2109 = vmatmul.mubr.f32.gmra.mrb[0].mxu0 %v1565
      %v2110 = vpop.f32.mrb[0].mxu0
      %v2111 = vadd.f32 %v1986, %v2110
      %v2112 = vpop.f32.mrb[0].mxu0
      %2113 = vdwg.mxu0
      %2114 = vmatprep.subr.mxu0 0.0
      %2115 = vmatpush1.msra.mxu0 %v1639
      %2116 = vmatprep.subr.mxu0 0.0
      %2117 = vmatpush1.msra.mxu0 %v1640
      %2118 = vmatprep.subr.mxu0 0.0
      %2119 = vmatpush1.msra.mxu0 %v1641
      %2120 = vmatprep.subr.mxu0 0.0
      %2121 = vmatpush1.msra.mxu0 %v1642
      %2122 = vmatprep.subr.mxu0 0.0
      %2123 = vmatpush1.msra.mxu0 %v1643
      %2124 = vmatprep.subr.mxu0 0.0
      %2125 = vmatpush1.msra.mxu0 %v1644
      %2126 = vmatprep.subr.mxu0 0.0
      %2127 = vmatpush1.msra.mxu0 %v1645
      %2128 = vmatprep.subr.mxu0 0.0
      %2129 = vmatpush1.msra.mxu0 %v1646
      %2130 = vmatprep.subr.mxu0 0.0
      %2131 = vmatpush1.msra.mxu0 %v1647
      %2132 = vmatprep.subr.mxu0 0.0
      %2133 = vmatpush1.msra.mxu0 %v1648
      %2134 = vmatprep.subr.mxu0 0.0
      %2135 = vmatpush1.msra.mxu0 %v1649
      %2136 = vmatprep.subr.mxu0 0.0
      %2137 = vmatpush1.msra.mxu0 %v1650
      %2138 = vmatprep.subr.mxu0 0.0
      %2139 = vmatpush1.msra.mxu0 %v1651
      %2140 = vmatprep.subr.mxu0 0.0
      %2141 = vmatpush1.msra.mxu0 %v1652
      %2142 = vmatprep.subr.mxu0 0.0
      %2143 = vmatpush1.msra.mxu0 %v1653
      %2144 = vmatprep.subr.mxu0 0.0
      %2145 = vmatpush1.msra.mxu0 %v1654
      %2146 = vmatprep.subr.mxu0 0.0
      %2147 = vmatpush1.msra.mxu0 %v1655
      %2148 = vmatprep.subr.mxu0 0.0
      %2149 = vmatpush1.msra.mxu0 %v1656
      %2150 = vmatprep.subr.mxu0 0.0
      %2151 = vmatpush1.msra.mxu0 %v1657
      %2152 = vmatprep.subr.mxu0 0.0
      %2153 = vmatpush1.msra.mxu0 %v1658
      %2154 = vmatprep.subr.mxu0 0.0
      %2155 = vmatpush1.msra.mxu0 %v1659
      %2156 = vmatprep.subr.mxu0 0.0
      %2157 = vmatpush1.msra.mxu0 %v1660
      %2158 = vmatprep.subr.mxu0 0.0
      %2159 = vmatpush1.msra.mxu0 %v1661
      %2160 = vmatprep.subr.mxu0 0.0
      %2161 = vmatpush1.msra.mxu0 %v1662
      %2162 = vmatprep.subr.mxu0 0.0
      %2163 = vmatpush1.msra.mxu0 %v1663
      %2164 = vmatprep.subr.mxu0 0.0
      %2165 = vmatpush1.msra.mxu0 %v1664
      %2166 = vmatprep.subr.mxu0 0.0
      %2167 = vmatpush1.msra.mxu0 %v1665
      %2168 = vmatprep.subr.mxu0 0.0
      %2169 = vmatpush1.msra.mxu0 %v1666
      %2170 = vmatprep.subr.mxu0 0.0
      %2171 = vmatpush1.msra.mxu0 %v1667
      %2172 = vmatprep.subr.mxu0 0.0
      %2173 = vmatpush1.msra.mxu0 %v1668
      %2174 = vmatprep.subr.mxu0 0.0
      %2175 = vmatpush1.msra.mxu0 %v1669
      %2176 = vmatprep.subr.mxu0 0.0
      %2177 = vmatpush1.msra.mxu0 %v1670
      %2178 = vmatprep.mubr.f32.mxu0 %v1436
      %2179 = vmatmul.mubr.f32.gmra.mrb[0].mxu0 %v1435
      %v2180 = vpop.f32.mrb[0].mxu0
      %v2181 = vadd.f32 %v2056, %v2180
      %v2182 = vpop.f32.mrb[0].mxu0
      %2183 = vmatprep.mubr.f32.mxu0 %v1448
      %2184 = vmatmul.mubr.f32.gmra.mrb[0].mxu0 %v1447
      %v2185 = vpop.f32.mrb[0].mxu0
      %v2186 = vadd.f32 %v2061, %v2185
      %v2187 = vpop.f32.mrb[0].mxu0
      %2188 = vmatprep.mubr.f32.mxu0 %v1460
      %2189 = vmatmul.mubr.f32.gmra.mrb[0].mxu0 %v1459
      %v2190 = vpop.f32.mrb[0].mxu0
      %v2191 = vadd.f32 %v2066, %v2190
      %v2192 = vpop.f32.mrb[0].mxu0
      %2193 = vmatprep.mubr.f32.mxu0 %v1472
      %2194 = vmatmul.mubr.f32.gmra.mrb[0].mxu0 %v1471
      %v2195 = vpop.f32.mrb[0].mxu0
      %v2196 = vadd.f32 %v2071, %v2195
      %v2197 = vpop.f32.mrb[0].mxu0
      %2198 = vmatprep.mubr.f32.mxu0 %v1484
      %2199 = vmatmul.mubr.f32.gmra.mrb[0].mxu0 %v1483
      %v2200 = vpop.f32.mrb[0].mxu0
      %v2201 = vadd.f32 %v2076, %v2200
      %v2202 = vpop.f32.mrb[0].mxu0
      %2203 = vmatprep.mubr.f32.mxu0 %v1496
      %2204 = vmatmul.mubr.f32.gmra.mrb[0].mxu0 %v1495
      %v2205 = vpop.f32.mrb[0].mxu0
      %v2206 = vadd.f32 %v2081, %v2205
      %v2207 = vpop.f32.mrb[0].mxu0
      %2208 = vmatprep.mubr.f32.mxu0 %v1508
      %2209 = vmatmul.mubr.f32.gmra.mrb[0].mxu0 %v1507
      %v2210 = vpop.f32.mrb[0].mxu0
      %v2211 = vadd.f32 %v2086, %v2210
      %v2212 = vpop.f32.mrb[0].mxu0
      %2213 = vmatprep.mubr.f32.mxu0 %v1520
      %2214 = vmatmul.mubr.f32.gmra.mrb[0].mxu0 %v1519
      %v2215 = vpop.f32.mrb[0].mxu0
      %v2216 = vadd.f32 %v2091, %v2215
      %v2217 = vpop.f32.mrb[0].mxu0
      %2218 = vmatprep.mubr.f32.mxu0 %v1532
      %2219 = vmatmul.mubr.f32.gmra.mrb[0].mxu0 %v1531
      %v2220 = vpop.f32.mrb[0].mxu0
      %v2221 = vadd.f32 %v2096, %v2220
      %v2222 = vpop.f32.mrb[0].mxu0
      %2223 = vmatprep.mubr.f32.mxu0 %v1544
      %2224 = vmatmul.mubr.f32.gmra.mrb[0].mxu0 %v1543
      %v2225 = vpop.f32.mrb[0].mxu0
      %v2226 = vadd.f32 %v2101, %v2225
      %v2227 = vpop.f32.mrb[0].mxu0
      %2228 = vmatprep.mubr.f32.mxu0 %v1556
      %2229 = vmatmul.mubr.f32.gmra.mrb[0].mxu0 %v1555
      %v2230 = vpop.f32.mrb[0].mxu0
      %v2231 = vadd.f32 %v2106, %v2230
      %v2232 = vpop.f32.mrb[0].mxu0
      %2233 = vmatprep.mubr.f32.mxu0 %v1568
      %2234 = vmatmul.mubr.f32.gmra.mrb[0].mxu0 %v1567
      %v2235 = vpop.f32.mrb[0].mxu0
      %v2236 = vadd.f32 %v2111, %v2235
      %v2237 = vpop.f32.mrb[0].mxu0
      %2238 = vdwg.mxu0
      %2239 = vmatprep.subr.mxu0 0.0
      %2240 = vmatpush1.msra.mxu0 %v1671
      %2241 = vmatprep.subr.mxu0 0.0
      %2242 = vmatpush1.msra.mxu0 %v1672
      %2243 = vmatprep.subr.mxu0 0.0
      %2244 = vmatpush1.msra.mxu0 %v1673
      %2245 = vmatprep.subr.mxu0 0.0
      %2246 = vmatpush1.msra.mxu0 %v1674
      %2247 = vmatprep.subr.mxu0 0.0
      %2248 = vmatpush1.msra.mxu0 %v1675
      %2249 = vmatprep.subr.mxu0 0.0
      %2250 = vmatpush1.msra.mxu0 %v1676
      %2251 = vmatprep.subr.mxu0 0.0
      %2252 = vmatpush1.msra.mxu0 %v1677
      %2253 = vmatprep.subr.mxu0 0.0
      %2254 = vmatpush1.msra.mxu0 %v1678
      %2255 = vmatprep.subr.mxu0 0.0
      %2256 = vmatpush1.msra.mxu0 %v1679
      %2257 = vmatprep.subr.mxu0 0.0
      %2258 = vmatpush1.msra.mxu0 %v1680
      %2259 = vmatprep.subr.mxu0 0.0
      %2260 = vmatpush1.msra.mxu0 %v1681
      %2261 = vmatprep.subr.mxu0 0.0
      %2262 = vmatpush1.msra.mxu0 %v1682
      %2263 = vmatprep.subr.mxu0 0.0
      %2264 = vmatpush1.msra.mxu0 %v1683
      %2265 = vmatprep.subr.mxu0 0.0
      %2266 = vmatpush1.msra.mxu0 %v1684
      %2267 = vmatprep.subr.mxu0 0.0
      %2268 = vmatpush1.msra.mxu0 %v1685
      %2269 = vmatprep.subr.mxu0 0.0
      %2270 = vmatpush1.msra.mxu0 %v1686
      %2271 = vmatprep.subr.mxu0 0.0
      %2272 = vmatpush1.msra.mxu0 %v1687
      %2273 = vmatprep.subr.mxu0 0.0
      %2274 = vmatpush1.msra.mxu0 %v1688
      %2275 = vmatprep.subr.mxu0 0.0
      %2276 = vmatpush1.msra.mxu0 %v1689
      %2277 = vmatprep.subr.mxu0 0.0
      %2278 = vmatpush1.msra.mxu0 %v1690
      %2279 = vmatprep.subr.mxu0 0.0
      %2280 = vmatpush1.msra.mxu0 %v1691
      %2281 = vmatprep.subr.mxu0 0.0
      %2282 = vmatpush1.msra.mxu0 %v1692
      %2283 = vmatprep.subr.mxu0 0.0
      %2284 = vmatpush1.msra.mxu0 %v1693
      %2285 = vmatprep.subr.mxu0 0.0
      %2286 = vmatpush1.msra.mxu0 %v1694
      %2287 = vmatprep.subr.mxu0 0.0
      %2288 = vmatpush1.msra.mxu0 %v1695
      %2289 = vmatprep.subr.mxu0 0.0
      %2290 = vmatpush1.msra.mxu0 %v1696
      %2291 = vmatprep.subr.mxu0 0.0
      %2292 = vmatpush1.msra.mxu0 %v1697
      %2293 = vmatprep.subr.mxu0 0.0
      %2294 = vmatpush1.msra.mxu0 %v1698
      %2295 = vmatprep.subr.mxu0 0.0
      %2296 = vmatpush1.msra.mxu0 %v1699
      %2297 = vmatprep.subr.mxu0 0.0
      %2298 = vmatpush1.msra.mxu0 %v1700
      %2299 = vmatprep.subr.mxu0 0.0
      %2300 = vmatpush1.msra.mxu0 %v1701
      %2301 = vmatprep.subr.mxu0 0.0
      %2302 = vmatpush1.msra.mxu0 %v1702
      %2303 = vmatprep.mubr.f32.mxu0 %v1438
      %2304 = vmatmul.mubr.f32.gmra.mrb[0].mxu0 %v1437
      %v2305 = vpop.f32.mrb[0].mxu0
      %v2306 = vadd.f32 %v2181, %v2305
      %v2307 = vpop.f32.mrb[0].mxu0
      %2308 = vmatprep.mubr.f32.mxu0 %v1450
      %2309 = vmatmul.mubr.f32.gmra.mrb[0].mxu0 %v1449
      %v2310 = vpop.f32.mrb[0].mxu0
      %v2311 = vadd.f32 %v2186, %v2310
      %v2312 = vpop.f32.mrb[0].mxu0
      %2313 = vmatprep.mubr.f32.mxu0 %v1462
      %2314 = vmatmul.mubr.f32.gmra.mrb[0].mxu0 %v1461
      %v2315 = vpop.f32.mrb[0].mxu0
      %v2316 = vadd.f32 %v2191, %v2315
      %v2317 = vpop.f32.mrb[0].mxu0
      %2318 = vmatprep.mubr.f32.mxu0 %v1474
      %2319 = vmatmul.mubr.f32.gmra.mrb[0].mxu0 %v1473
      %v2320 = vpop.f32.mrb[0].mxu0
      %v2321 = vadd.f32 %v2196, %v2320
      %v2322 = vpop.f32.mrb[0].mxu0
      %2323 = vmatprep.mubr.f32.mxu0 %v1486
      %2324 = vmatmul.mubr.f32.gmra.mrb[0].mxu0 %v1485
      %v2325 = vpop.f32.mrb[0].mxu0
      %v2326 = vadd.f32 %v2201, %v2325
      %v2327 = vpop.f32.mrb[0].mxu0
      %2328 = vmatprep.mubr.f32.mxu0 %v1498
      %2329 = vmatmul.mubr.f32.gmra.mrb[0].mxu0 %v1497
      %v2330 = vpop.f32.mrb[0].mxu0
      %v2331 = vadd.f32 %v2206, %v2330
      %v2332 = vpop.f32.mrb[0].mxu0
      %2333 = vmatprep.mubr.f32.mxu0 %v1510
      %2334 = vmatmul.mubr.f32.gmra.mrb[0].mxu0 %v1509
      %v2335 = vpop.f32.mrb[0].mxu0
      %v2336 = vadd.f32 %v2211, %v2335
      %v2337 = vpop.f32.mrb[0].mxu0
      %2338 = vmatprep.mubr.f32.mxu0 %v1522
      %2339 = vmatmul.mubr.f32.gmra.mrb[0].mxu0 %v1521
      %v2340 = vpop.f32.mrb[0].mxu0
      %v2341 = vadd.f32 %v2216, %v2340
      %v2342 = vpop.f32.mrb[0].mxu0
      %2343 = vmatprep.mubr.f32.mxu0 %v1534
      %2344 = vmatmul.mubr.f32.gmra.mrb[0].mxu0 %v1533
      %v2345 = vpop.f32.mrb[0].mxu0
      %v2346 = vadd.f32 %v2221, %v2345
      %v2347 = vpop.f32.mrb[0].mxu0
      %2348 = vmatprep.mubr.f32.mxu0 %v1546
      %2349 = vmatmul.mubr.f32.gmra.mrb[0].mxu0 %v1545
      %v2350 = vpop.f32.mrb[0].mxu0
      %v2351 = vadd.f32 %v2226, %v2350
      %v2352 = vpop.f32.mrb[0].mxu0
      %2353 = vmatprep.mubr.f32.mxu0 %v1558
      %2354 = vmatmul.mubr.f32.gmra.mrb[0].mxu0 %v1557
      %v2355 = vpop.f32.mrb[0].mxu0
      %v2356 = vadd.f32 %v2231, %v2355
      %v2357 = vpop.f32.mrb[0].mxu0
      %2358 = vmatprep.mubr.f32.mxu0 %v1570
      %2359 = vmatmul.mubr.f32.gmra.mrb[0].mxu0 %v1569
      %v2360 = vpop.f32.mrb[0].mxu0
      %v2361 = vadd.f32 %v2236, %v2360
      %v2362 = vpop.f32.mrb[0].mxu0
      %2363 = vdwg.mxu0
      %2364 = vmatprep.subr.mxu0 0.0
      %2365 = vmatpush1.msra.mxu0 %v1703
      %2366 = vmatprep.subr.mxu0 0.0
      %2367 = vmatpush1.msra.mxu0 %v1704
      %2368 = vmatprep.subr.mxu0 0.0
      %2369 = vmatpush1.msra.mxu0 %v1705
      %2370 = vmatprep.subr.mxu0 0.0
      %2371 = vmatpush1.msra.mxu0 %v1706
      %2372 = vmatprep.subr.mxu0 0.0
      %2373 = vmatpush1.msra.mxu0 %v1707
      %2374 = vmatprep.subr.mxu0 0.0
      %2375 = vmatpush1.msra.mxu0 %v1708
      %2376 = vmatprep.subr.mxu0 0.0
      %2377 = vmatpush1.msra.mxu0 %v1709
      %2378 = vmatprep.subr.mxu0 0.0
      %2379 = vmatpush1.msra.mxu0 %v1710
      %2380 = vmatprep.subr.mxu0 0.0
      %2381 = vmatpush1.msra.mxu0 %v1711
      %2382 = vmatprep.subr.mxu0 0.0
      %2383 = vmatpush1.msra.mxu0 %v1712
      %2384 = vmatprep.subr.mxu0 0.0
      %2385 = vmatpush1.msra.mxu0 %v1713
      %2386 = vmatprep.subr.mxu0 0.0
      %2387 = vmatpush1.msra.mxu0 %v1714
      %2388 = vmatprep.subr.mxu0 0.0
      %2389 = vmatpush1.msra.mxu0 %v1715
      %2390 = vmatprep.subr.mxu0 0.0
      %2391 = vmatpush1.msra.mxu0 %v1716
      %2392 = vmatprep.subr.mxu0 0.0
      %2393 = vmatpush1.msra.mxu0 %v1717
      %2394 = vmatprep.subr.mxu0 0.0
      %2395 = vmatpush1.msra.mxu0 %v1718
      %2396 = vmatprep.subr.mxu0 0.0
      %2397 = vmatpush1.msra.mxu0 %v1719
      %2398 = vmatprep.subr.mxu0 0.0
      %2399 = vmatpush1.msra.mxu0 %v1720
      %2400 = vmatprep.subr.mxu0 0.0
      %2401 = vmatpush1.msra.mxu0 %v1721
      %2402 = vmatprep.subr.mxu0 0.0
      %2403 = vmatpush1.msra.mxu0 %v1722
      %2404 = vmatprep.subr.mxu0 0.0
      %2405 = vmatpush1.msra.mxu0 %v1723
      %2406 = vmatprep.subr.mxu0 0.0
      %2407 = vmatpush1.msra.mxu0 %v1724
      %2408 = vmatprep.subr.mxu0 0.0
      %2409 = vmatpush1.msra.mxu0 %v1725
      %2410 = vmatprep.subr.mxu0 0.0
      %2411 = vmatpush1.msra.mxu0 %v1726
      %2412 = vmatprep.subr.mxu0 0.0
      %2413 = vmatpush1.msra.mxu0 %v1727
      %2414 = vmatprep.subr.mxu0 0.0
      %2415 = vmatpush1.msra.mxu0 %v1728
      %2416 = vmatprep.subr.mxu0 0.0
      %2417 = vmatpush1.msra.mxu0 %v1729
      %2418 = vmatprep.subr.mxu0 0.0
      %2419 = vmatpush1.msra.mxu0 %v1730
      %2420 = vmatprep.subr.mxu0 0.0
      %2421 = vmatpush1.msra.mxu0 %v1731
      %2422 = vmatprep.subr.mxu0 0.0
      %2423 = vmatpush1.msra.mxu0 %v1732
      %2424 = vmatprep.subr.mxu0 0.0
      %2425 = vmatpush1.msra.mxu0 %v1733
      %2426 = vmatprep.subr.mxu0 0.0
      %2427 = vmatpush1.msra.mxu0 %v1734
      %2428 = vmatprep.mubr.f32.mxu0 %v1440
      %2429 = vmatmul.mubr.f32.gmra.mrb[0].mxu0 %v1439
      %v2430 = vpop.f32.mrb[0].mxu0
      %v2431 = vadd.f32 %v2306, %v2430
      %v2432 = vpop.f32.mrb[0].mxu0
      %2433 = vmatprep.mubr.f32.mxu0 %v1452
      %2434 = vmatmul.mubr.f32.gmra.mrb[0].mxu0 %v1451
      %v2435 = vpop.f32.mrb[0].mxu0
      %v2436 = vadd.f32 %v2311, %v2435
      %v2437 = vpop.f32.mrb[0].mxu0
      %2438 = vmatprep.mubr.f32.mxu0 %v1464
      %2439 = vmatmul.mubr.f32.gmra.mrb[0].mxu0 %v1463
      %v2440 = vpop.f32.mrb[0].mxu0
      %v2441 = vadd.f32 %v2316, %v2440
      %v2442 = vpop.f32.mrb[0].mxu0
      %2443 = vmatprep.mubr.f32.mxu0 %v1476
      %2444 = vmatmul.mubr.f32.gmra.mrb[0].mxu0 %v1475
      %v2445 = vpop.f32.mrb[0].mxu0
      %v2446 = vadd.f32 %v2321, %v2445
      %v2447 = vpop.f32.mrb[0].mxu0
      %2448 = vmatprep.mubr.f32.mxu0 %v1488
      %2449 = vmatmul.mubr.f32.gmra.mrb[0].mxu0 %v1487
      %v2450 = vpop.f32.mrb[0].mxu0
      %v2451 = vadd.f32 %v2326, %v2450
      %v2452 = vpop.f32.mrb[0].mxu0
      %2453 = vmatprep.mubr.f32.mxu0 %v1500
      %2454 = vmatmul.mubr.f32.gmra.mrb[0].mxu0 %v1499
      %v2455 = vpop.f32.mrb[0].mxu0
      %v2456 = vadd.f32 %v2331, %v2455
      %v2457 = vpop.f32.mrb[0].mxu0
      %2458 = vmatprep.mubr.f32.mxu0 %v1512
      %2459 = vmatmul.mubr.f32.gmra.mrb[0].mxu0 %v1511
      %v2460 = vpop.f32.mrb[0].mxu0
      %v2461 = vadd.f32 %v2336, %v2460
      %v2462 = vpop.f32.mrb[0].mxu0
      %2463 = vmatprep.mubr.f32.mxu0 %v1524
      %2464 = vmatmul.mubr.f32.gmra.mrb[0].mxu0 %v1523
      %v2465 = vpop.f32.mrb[0].mxu0
      %v2466 = vadd.f32 %v2341, %v2465
      %v2467 = vpop.f32.mrb[0].mxu0
      %2468 = vmatprep.mubr.f32.mxu0 %v1536
      %2469 = vmatmul.mubr.f32.gmra.mrb[0].mxu0 %v1535
      %v2470 = vpop.f32.mrb[0].mxu0
      %v2471 = vadd.f32 %v2346, %v2470
      %v2472 = vpop.f32.mrb[0].mxu0
      %2473 = vmatprep.mubr.f32.mxu0 %v1548
      %2474 = vmatmul.mubr.f32.gmra.mrb[0].mxu0 %v1547
      %v2475 = vpop.f32.mrb[0].mxu0
      %v2476 = vadd.f32 %v2351, %v2475
      %v2477 = vpop.f32.mrb[0].mxu0
      %2478 = vmatprep.mubr.f32.mxu0 %v1560
      %2479 = vmatmul.mubr.f32.gmra.mrb[0].mxu0 %v1559
      %v2480 = vpop.f32.mrb[0].mxu0
      %v2481 = vadd.f32 %v2356, %v2480
      %v2482 = vpop.f32.mrb[0].mxu0
      %2483 = vmatprep.mubr.f32.mxu0 %v1572
      %2484 = vmatmul.mubr.f32.gmra.mrb[0].mxu0 %v1571
      %v2485 = vpop.f32.mrb[0].mxu0
      %v2486 = vadd.f32 %v2361, %v2485
      %v2487 = vpop.f32.mrb[0].mxu0
      %2488 = vdwg.mxu0
      %2489 = vmatprep.subr.mxu0 0.0
      %2490 = vmatpush1.msra.mxu0 %v1735
      %2491 = vmatprep.subr.mxu0 0.0
      %2492 = vmatpush1.msra.mxu0 %v1736
      %2493 = vmatprep.subr.mxu0 0.0
      %2494 = vmatpush1.msra.mxu0 %v1737
      %2495 = vmatprep.subr.mxu0 0.0
      %2496 = vmatpush1.msra.mxu0 %v1738
      %2497 = vmatprep.subr.mxu0 0.0
      %2498 = vmatpush1.msra.mxu0 %v1739
      %2499 = vmatprep.subr.mxu0 0.0
      %2500 = vmatpush1.msra.mxu0 %v1740
      %2501 = vmatprep.subr.mxu0 0.0
      %2502 = vmatpush1.msra.mxu0 %v1741
      %2503 = vmatprep.subr.mxu0 0.0
      %2504 = vmatpush1.msra.mxu0 %v1742
      %2505 = vmatprep.subr.mxu0 0.0
      %2506 = vmatpush1.msra.mxu0 %v1743
      %2507 = vmatprep.subr.mxu0 0.0
      %2508 = vmatpush1.msra.mxu0 %v1744
      %2509 = vmatprep.subr.mxu0 0.0
      %2510 = vmatpush1.msra.mxu0 %v1745
      %2511 = vmatprep.subr.mxu0 0.0
      %2512 = vmatpush1.msra.mxu0 %v1746
      %2513 = vmatprep.subr.mxu0 0.0
      %2514 = vmatpush1.msra.mxu0 %v1747
      %2515 = vmatprep.subr.mxu0 0.0
      %2516 = vmatpush1.msra.mxu0 %v1748
      %2517 = vmatprep.subr.mxu0 0.0
      %2518 = vmatpush1.msra.mxu0 %v1749
      %2519 = vmatprep.subr.mxu0 0.0
      %2520 = vmatpush1.msra.mxu0 %v1750
      %2521 = vmatprep.subr.mxu0 0.0
      %2522 = vmatpush1.msra.mxu0 %v1751
      %2523 = vmatprep.subr.mxu0 0.0
      %2524 = vmatpush1.msra.mxu0 %v1752
      %2525 = vmatprep.subr.mxu0 0.0
      %2526 = vmatpush1.msra.mxu0 %v1753
      %2527 = vmatprep.subr.mxu0 0.0
      %2528 = vmatpush1.msra.mxu0 %v1754
      %2529 = vmatprep.subr.mxu0 0.0
      %2530 = vmatpush1.msra.mxu0 0.0
      %2531 = vmatprep.subr.mxu0 0.0
      %2532 = vmatpush1.msra.mxu0 0.0
      %2533 = vmatprep.subr.mxu0 0.0
      %2534 = vmatpush1.msra.mxu0 0.0
      %2535 = vmatprep.subr.mxu0 0.0
      %2536 = vmatpush1.msra.mxu0 0.0
      %2537 = vmatprep.subr.mxu0 0.0
      %2538 = vmatpush1.msra.mxu0 0.0
      %2539 = vmatprep.subr.mxu0 0.0
      %2540 = vmatpush1.msra.mxu0 0.0
      %2541 = vmatprep.subr.mxu0 0.0
      %2542 = vmatpush1.msra.mxu0 0.0
      %2543 = vmatprep.subr.mxu0 0.0
      %2544 = vmatpush1.msra.mxu0 0.0
      %2545 = vmatprep.subr.mxu0 0.0
      %2546 = vmatpush1.msra.mxu0 0.0
      %2547 = vmatprep.subr.mxu0 0.0
      %2548 = vmatpush1.msra.mxu0 0.0
      %2549 = vmatprep.subr.mxu0 0.0
      %2550 = vmatpush1.msra.mxu0 0.0
      %2551 = vmatprep.subr.mxu0 0.0
      %2552 = vmatpush1.msra.mxu0 0.0
      %2553 = vmatprep.mubr.f32.mxu0 %v1829
      %2554 = vmatmul.mubr.f32.gmra.mrb[0].mxu0 %v1441
      %v2555 = vpop.f32.mrb[0].mxu0
      %v2556 = vadd.f32 %v2431, %v2555
      %v2557 = vpop.f32.mrb[0].mxu0
      %2558 = vmatprep.mubr.f32.mxu0 %v1832
      %2559 = vmatmul.mubr.f32.gmra.mrb[0].mxu0 %v1453
      %v2560 = vpop.f32.mrb[0].mxu0
      %v2561 = vadd.f32 %v2436, %v2560
      %v2562 = vpop.f32.mrb[0].mxu0
      %2563 = vmatprep.mubr.f32.mxu0 %v1835
      %2564 = vmatmul.mubr.f32.gmra.mrb[0].mxu0 %v1465
      %v2565 = vpop.f32.mrb[0].mxu0
      %v2566 = vadd.f32 %v2441, %v2565
      %v2567 = vpop.f32.mrb[0].mxu0
      %2568 = vmatprep.mubr.f32.mxu0 %v1838
      %2569 = vmatmul.mubr.f32.gmra.mrb[0].mxu0 %v1477
      %v2570 = vpop.f32.mrb[0].mxu0
      %v2571 = vadd.f32 %v2446, %v2570
      %v2572 = vpop.f32.mrb[0].mxu0
      %2573 = vmatprep.mubr.f32.mxu0 %v1841
      %2574 = vmatmul.mubr.f32.gmra.mrb[0].mxu0 %v1489
      %v2575 = vpop.f32.mrb[0].mxu0
      %v2576 = vadd.f32 %v2451, %v2575
      %v2577 = vpop.f32.mrb[0].mxu0
      %2578 = vmatprep.mubr.f32.mxu0 %v1844
      %2579 = vmatmul.mubr.f32.gmra.mrb[0].mxu0 %v1501
      %v2580 = vpop.f32.mrb[0].mxu0
      %v2581 = vadd.f32 %v2456, %v2580
      %v2582 = vpop.f32.mrb[0].mxu0
      %2583 = vmatprep.mubr.f32.mxu0 %v1847
      %2584 = vmatmul.mubr.f32.gmra.mrb[0].mxu0 %v1513
      %v2585 = vpop.f32.mrb[0].mxu0
      %v2586 = vadd.f32 %v2461, %v2585
      %v2587 = vpop.f32.mrb[0].mxu0
      %2588 = vmatprep.mubr.f32.mxu0 %v1850
      %2589 = vmatmul.mubr.f32.gmra.mrb[0].mxu0 %v1525
      %v2590 = vpop.f32.mrb[0].mxu0
      %v2591 = vadd.f32 %v2466, %v2590
      %v2592 = vpop.f32.mrb[0].mxu0
      %2593 = vmatprep.mubr.f32.mxu0 %v1853
      %2594 = vmatmul.mubr.f32.gmra.mrb[0].mxu0 %v1537
      %v2595 = vpop.f32.mrb[0].mxu0
      %v2596 = vadd.f32 %v2471, %v2595
      %v2597 = vpop.f32.mrb[0].mxu0
      %2598 = vmatprep.mubr.f32.mxu0 %v1856
      %2599 = vmatmul.mubr.f32.gmra.mrb[0].mxu0 %v1549
      %v2600 = vpop.f32.mrb[0].mxu0
      %v2601 = vadd.f32 %v2476, %v2600
      %v2602 = vpop.f32.mrb[0].mxu0
      %2603 = vmatprep.mubr.f32.mxu0 %v1859
      %2604 = vmatmul.mubr.f32.gmra.mrb[0].mxu0 %v1561
      %v2605 = vpop.f32.mrb[0].mxu0
      %v2606 = vadd.f32 %v2481, %v2605
      %v2607 = vpop.f32.mrb[0].mxu0
      %2608 = vmatprep.mubr.f32.mxu0 %v1862
      %2609 = vmatmul.mubr.f32.gmra.mrb[0].mxu0 %v1573
      %v2610 = vpop.f32.mrb[0].mxu0
      %v2611 = vadd.f32 %v2486, %v2610
      %v2612 = vpop.f32.mrb[0].mxu0
      %2613 = vdwg.mxu0
      %v2614 = vmax.f32 %v2556, 0.0
      %v2615 = vmax.f32 %v2561, 0.0
      %v2616 = vmax.f32 %v2566, 0.0
      %v2617 = vmax.f32 %v2571, 0.0
      %v2618 = vmax.f32 %v2576, 0.0
      %v2619 = vmax.f32 %v2581, 0.0
      %v2620 = vmax.f32 %v2586, 0.0
      %v2621 = vmax.f32 %v2591, 0.0
      %v2622 = vmax.f32 %v2596, 0.0
      %v2623 = vmax.f32 %v2601, 0.0
      %v2624 = vmax.f32 %v2606, 0.0
      %v2625 = vmax.f32 %v2611, 0.0
      %2626 = vst.msk [vmem:[%s251] sm:$0xff] %vm750, %v2614
      %2627 = vst.msk [vmem:[%s251 + $0x8] sm:$0xff] %vm750, %v2615
      %2628 = vst.msk [vmem:[%s251 + $0x10] sm:$0xff] %vm750, %v2616
      %2629 = vst.msk [vmem:[%s251 + $0x18] sm:$0xff] %vm750, %v2617
      %2630 = vst.msk [vmem:[%s251 + $0x20] sm:$0xff] %vm750, %v2618
      %2631 = vst.msk [vmem:[%s251 + $0x28] sm:$0xff] %vm750, %v2619
      %2632 = vst.msk [vmem:[%s251 + $0x30] sm:$0xff] %vm750, %v2620
      %2633 = vst.msk [vmem:[%s251 + $0x38] sm:$0xff] %vm750, %v2621
      %2634 = vst.msk [vmem:[%s251 + $0x40] sm:$0xff] %vm750, %v2622
      %2635 = vst.msk [vmem:[%s251 + $0x48] sm:$0xff] %vm750, %v2623
      %2636 = vst.msk [vmem:[%s251 + $0x50] sm:$0xff] %vm750, %v2624
      %2637 = vst.msk [vmem:[%s251 + $0x58] sm:$0xff] %vm750, %v2625
      %p2638 = scmp.lt.s32.totalorder %s17, 1
      %s2639 = scalar_select %p2638, %s17, 1
      %s2640 = smul.addr %s2639, 12
      %s2641 = smul.addr %s2640, 8
      %s2642 = scalar_lea.vmem %s6, %s2641
      // Predicated region
      $region45: #{model_forward.1} parent=43 // pred_check
        %p2643 = pneg %p166
      $region46: #{model_forward.1} parent=43 // pred_check_branch
        %2645 = sbr.rel (%p2643) target = $region48
      $region47: #{model_forward.1} parent=43 // pred_region
        _
      $region48: #{model_forward.1} parent=43 // pred_fallthru
        _
    $region44: #{model_forward.1} parent=5 // pred_fallthru
      _
    %p2646 = scmp.le.s32.totalorder 2, %s12
    // Predicated region
    $region49: #{model_forward.1} parent=5 // pred_check
      %p2647 = pneg %p2646
    $region50: #{model_forward.1} parent=5 // pred_check_branch
      %2649 = sbr.rel (%p2647) target = $region52
    $region51: #{model_forward.1} parent=5 // pred_region
      %s2650 = ssub.s32 %s12, 2
      // Predicated region
      $region53: #{model_forward.1} parent=51 // pred_check
        %p2651 = pneg %p172
      $region54: #{model_forward.1} parent=51 // pred_check_branch
        %2653 = sbr.rel (%p2651) target = $region56
      $region55: #{model_forward.1} parent=51 // pred_region
        %p2654 = scmp.lt.s32.totalorder %s18, 1
        %s2655 = scalar_select %p2654, %s18, 1
        %s2656 = smul.addr %s2655, 12
        %s2657 = smul.addr %s2656, 8
        %s2658 = scalar_lea.vmem %s6, %s2657
      $region56: #{model_forward.1} parent=51 // pred_fallthru
        _
    $region52: #{model_forward.1} parent=5 // pred_fallthru
      _
  $region6: #{model_forward.1} parent=0 // loop_footer
    %s16 = sadd.s32 1, %s12
  $region7: #{model_forward.1} parent=0 // loop_footer_branch
    %11 = sbr.rel target = $region3
  $region8: #{model_forward.1} parent=0 // loop_exit
    _

</llo_original>
